<compile_context>
chip_gen: v7x
topology: tpu7x:2x2x1
jax: 0.10.0
libtpu: 0.0.40
codegen_flags: <defaults>
</compile_context>

<pallas_src>
import functools

import jax
import jax.numpy as jnp
from jax.experimental import pallas as pl
from jax.experimental.pallas import tpu as pltpu

_EPS = 1e-5                       # PyTorch LayerNorm default eps
_INV_SQRT2 = 0.7071067811865476
_LANES = 128


def _round_up(n, m):
    return ((n + m - 1) // m) * m


def _gelu_exact(x):
    # PyTorch F.gelu default = exact erf formulation.
    return 0.5 * x * (1.0 + jax.lax.erf(x * _INV_SQRT2))


def _bf16(x):
    return x.astype(jnp.bfloat16)


def _layernorm_padded(v, g, b, inv_n):
    """LayerNorm over a zero-padded feature axis.

    Precondition: padded lanes of `v` are exactly zero (they contribute nothing
    to the sums) and `g`/`b` are zero-padded (so padded output lanes stay 0).
    `inv_n` = 1 / true_feature_count.  Uses rsqrt (EUP) instead of divide.
    """
    mu = jnp.sum(v, axis=-1, keepdims=True) * inv_n
    ssq = jnp.sum(v * v, axis=-1, keepdims=True) * inv_n
    var = ssq - mu * mu
    return (v - mu) * jax.lax.rsqrt(var + _EPS) * g + b


def _expert_kernel(use_memory, B, S, D, F, L, x_ref, *refs):
    if use_memory:
        (ip_w, ip_b, ff1_w, ff1_b, ff2_w, ff2_b, ln_g, ln_b,
         mq_w, mq_b, mkv_w, mkv_b, op_w, op_b, fn_g, fn_b,
         out_ref, hlast_ref) = refs
    else:
        (ip_w, ip_b, ff1_w, ff1_b, ff2_w, ff2_b, ln_g, ln_b,
         op_w, op_b, fn_g, fn_b, out_ref, hlast_ref) = refs

    H = 2 * F                      # true ff1 width; fused gate logit is column H
    inv_F = 1.0 / F
    inv_D = 1.0 / D
    Dp = x_ref.shape[-1]           # padded d_model
    Fp = ip_w.shape[-1]            # padded d_ff

    x = x_ref[...]                                               # (B*S, Dp) f32

    # h = input_proj(x)   -- bf16 operands, f32 accumulate (single MXU pass)
    h = jnp.dot(_bf16(x), ip_w[...], preferred_element_type=jnp.float32) + ip_b[...]

    # Gated feed-forward layers (L is a static Python int; weights fully resident).
    # TODO(synk): for large d_ff / n_layers, block over the layer index with an
    # 'arbitrary' grid axis (or pltpu.emit_pipeline) instead of keeping all
    # stacked FF weights resident -- needed to fit v7x's 64 MiB VMEM.
    for l in range(L):
        u = jnp.dot(_bf16(h), ff1_w[l], preferred_element_type=jnp.float32) + ff1_b[l]
        gate = jax.nn.sigmoid(u[:, H:H + 1])          # fused gate column (no reduce)
        a = _gelu_exact(u)                            # extra cols hit zero ff2 rows
        h2 = jnp.dot(_bf16(a), ff2_w[l], preferred_element_type=jnp.float32) + ff2_b[l]
        h2 = _layernorm_padded(h2, ln_g[l], ln_b[l], inv_F)
        h = h + gate * h2                             # dropout = identity

    # new_memory row = h[:, -1] taken BEFORE the memory residual (matches PyTorch).
    hlast_ref[...] = h.reshape(B, S, Fp)[:, S - 1:S, :]

    if use_memory:
        q = jnp.dot(_bf16(x), mq_w[...], preferred_element_type=jnp.float32) + mq_b[...]
        kv = jnp.dot(_bf16(h), mkv_w[...], preferred_element_type=jnp.float32) + mkv_b[...]
        k, v = kv[:, :Dp], kv[:, Dp:]                 # fused key|value projection
        q3 = q.reshape(B, S, Dp)
        k3 = k.reshape(B, S, Dp)
        v3 = v.reshape(B, S, Dp)
        # scores[b, s, t] = q3[b, s, :] . k3[b, t, :]   (no transposed copy of k)
        scores = jax.lax.dot_general(
            _bf16(q3), _bf16(k3),
            dimension_numbers=(((2,), (2,)), ((0,), (0,))),
            preferred_element_type=jnp.float32) * (D ** -0.5)
        scores = scores - jnp.max(scores, axis=-1, keepdims=True)
        p = jnp.exp(scores)
        # EUP reciprocal (approx=True also works; exact keeps validation tight
        # and the denominator is only S lanes wide).
        attn = p * pl.reciprocal(jnp.sum(p, axis=-1, keepdims=True), approx=False)
        mem_out = jax.lax.dot_general(
            _bf16(attn), _bf16(v3),
            dimension_numbers=(((2,), (1,)), ((0,), (0,))),
            preferred_element_type=jnp.float32)
        h = h + mem_out.reshape(B * S, Dp)            # dropout = identity (D == F)

    out = jnp.dot(_bf16(h), op_w[...], preferred_element_type=jnp.float32) + op_b[...]
    out_ref[...] = _layernorm_padded(x + out, fn_g[...], fn_b[...], inv_D)


def pack_params(params):
    """One-time (load-time) packing: pad feature dims to 128-lane multiples,
    fuse gate into ff1 and memory_key|memory_value into one weight, and store
    matmul weights as bf16 (biases / LN params stay f32)."""
    D, F = params["ip_w"].shape
    L = params["ff1_w"].shape[0]
    H = 2 * F
    Dp, Fp = _round_up(D, _LANES), _round_up(F, _LANES)
    Hp = _round_up(H + 1, _LANES)                      # +1: fused gate column at H

    def pad_w(a, rows, cols):                          # 2-D weight -> bf16, zero-padded
        a = jnp.asarray(a, jnp.float32)
        return jnp.pad(a, ((0, rows - a.shape[0]),
                           (0, cols - a.shape[1]))).astype(jnp.bfloat16)

    def pad_v(a, cols):                                # (1, n) bias/LN param -> f32
        a = jnp.asarray(a, jnp.float32)
        return jnp.pad(a, ((0, 0), (0, cols - a.shape[1])))

    # ff1 with the gate weight fused in as column H (the gate has no bias).
    ff1 = jnp.zeros((L, Fp, Hp), jnp.float32)
    ff1 = ff1.at[:, :F, :H].set(params["ff1_w"])
    ff1 = ff1.at[:, :F, H].set(params["gate_w"][:, 0, :])
    ff1_b = jnp.zeros((L, 1, Hp), jnp.float32).at[:, :, :H].set(params["ff1_b"])

    ff2 = jnp.zeros((L, Hp, Fp), jnp.float32).at[:, :H, :F].set(params["ff2_w"])
    ff2_b = jnp.zeros((L, 1, Fp), jnp.float32).at[:, :, :F].set(params["ff2_b"])
    ln_g = jnp.zeros((L, 1, Fp), jnp.float32).at[:, :, :F].set(params["ln_g"])
    ln_b = jnp.zeros((L, 1, Fp), jnp.float32).at[:, :, :F].set(params["ln_b"])

    return dict(
        D=D, F=F, L=L, Dp=Dp, Fp=Fp,
        ip_w=pad_w(params["ip_w"], Dp, Fp), ip_b=pad_v(params["ip_b"], Fp),
        ff1_w=ff1.astype(jnp.bfloat16), ff1_b=ff1_b,
        ff2_w=ff2.astype(jnp.bfloat16), ff2_b=ff2_b,
        ln_g=ln_g, ln_b=ln_b,
        mq_w=pad_w(params["mq_w"], Dp, Dp), mq_b=pad_v(params["mq_b"], Dp),
        mkv_w=jnp.concatenate([pad_w(params["mk_w"], Fp, Dp),
                               pad_w(params["mv_w"], Fp, Dp)], axis=1),
        mkv_b=jnp.concatenate([pad_v(params["mk_b"], Dp),
                               pad_v(params["mv_b"], Dp)], axis=1),
        op_w=pad_w(params["op_w"], Fp, Dp), op_b=pad_v(params["op_b"], Dp),
        fn_g=pad_v(params["fn_g"], Dp), fn_b=pad_v(params["fn_b"], Dp),
    )


_PARAMS_A = ["ip_w", "ip_b", "ff1_w", "ff1_b", "ff2_w", "ff2_b", "ln_g", "ln_b"]
_PARAMS_MEM = ["mq_w", "mq_b", "mkv_w", "mkv_b"]
_PARAMS_B = ["op_w", "op_b", "fn_g", "fn_b"]


def expert_forward(x, packed, memory=None):
    B, S, D = x.shape
    assert D == packed["D"]
    F, L, Dp, Fp = packed["F"], packed["L"], packed["Dp"], packed["Fp"]
    use_memory = memory is not None
    if use_memory:
        # PyTorch adds memory_output (d_model wide) onto h (d_ff wide) and appends
        # h[:, -1:] (d_ff wide) to memory: both require d_model == d_ff.
        assert D == F and memory.shape[-1] == F

    names = _PARAMS_A + (_PARAMS_MEM if use_memory else []) + _PARAMS_B
    args = [packed[n] for n in names]

    # Fold (B, S) into rows and pad features to the 128-lane tile (zeros).
    x2 = jnp.pad(x.reshape(B * S, D).astype(jnp.float32), ((0, 0), (0, Dp - D)))

    def full_spec(a):
        nd = a.ndim
        return pl.BlockSpec(a.shape, lambda i, _nd=nd: (0,) * _nd)

    out_shapes = (jax.ShapeDtypeStruct((B * S, Dp), jnp.float32),
                  jax.ShapeDtypeStruct((B, 1, Fp), jnp.float32))
    out_specs = (pl.BlockSpec((B * S, Dp), lambda i: (0, 0)),
                 pl.BlockSpec((B, 1, Fp), lambda i: (0, 0, 0)))

    kernel = functools.partial(_expert_kernel, use_memory, B, S, D, F, L)
    out2, hlast = pl.pallas_call(
        kernel,
        grid=(1,),                 # single fused step: batch + seq folded together
        in_specs=[full_spec(x2)] + [full_spec(a) for a in args],
        out_specs=out_specs,
        out_shape=out_shapes,
        compiler_params=pltpu.CompilerParams(
            dimension_semantics=("arbitrary",),
            vmem_limit_bytes=32 * 1024 * 1024),
    )(x2, *args)
    # TODO(synk): on v7x, reintroduce a 'parallel' batch grid axis so both
    # TensorCores are used once B / per-step work is large enough.

    out = out2[:, :D].reshape(B, S, D)
    h_last = hlast[:, :, :F]                                   # (B, 1, d_ff)
    if use_memory:
        new_memory = jnp.concatenate([memory[:, 1:], h_last], axis=1)
    else:
        new_memory = h_last
    return out, new_memory


def expert_reference(x, params, memory=None, *, bf16_matmuls=False):
    """Pure-JAX reference mirroring the PyTorch forward (dropout = identity).

    bf16_matmuls=True reproduces the kernel's matmul numerics (bf16 operands,
    f32 accumulation); False is the full-f32 ('highest' per-dot) reference.
    """
    if bf16_matmuls:
        def mm(a, b):
            return jnp.matmul(a.astype(jnp.bfloat16), b.astype(jnp.bfloat16),
                              preferred_element_type=jnp.float32)
    else:
        def mm(a, b):
            return jnp.matmul(a, b, precision=jax.lax.Precision.HIGHEST,
                              preferred_element_type=jnp.float32)

    def ln(v, g, b):
        mu = jnp.mean(v, -1, keepdims=True)
        var = jnp.mean((v - mu) ** 2, -1, keepdims=True)
        return (v - mu) / jnp.sqrt(var + _EPS) * g + b

    D = x.shape[-1]
    h = mm(x, params["ip_w"]) + params["ip_b"]
    L = params["ff1_w"].shape[0]
    for l in range(L):
        u = mm(h, params["ff1_w"][l]) + params["ff1_b"][l]
        gate = jax.nn.sigmoid(mm(h, params["gate_w"][l].T))    # (B, S, 1)
        h2 = mm(_gelu_exact(u), params["ff2_w"][l]) + params["ff2_b"][l]
        h2 = ln(h2, params["ln_g"][l], params["ln_b"][l])
        h = h + gate * h2
    if memory is not None:
        q = mm(x, params["mq_w"]) + params["mq_b"]
        k = mm(h, params["mk_w"]) + params["mk_b"]
        v = mm(h, params["mv_w"]) + params["mv_b"]
        scores = mm(q, jnp.swapaxes(k, -1, -2)) / (D ** 0.5)
        attn = jax.nn.softmax(scores, axis=-1)
        mem_out = mm(attn, v)
        new_memory = jnp.concatenate([memory[:, 1:], h[:, -1:]], axis=1)
        h = h + mem_out
    else:
        new_memory = h[:, -1:]
    out = mm(h, params["op_w"]) + params["op_b"]
    out = ln(x + out, params["fn_g"], params["fn_b"])
    return out, new_memory


def init_params(key, d_model, d_ff, n_layers):
    keys = iter(jax.random.split(key, 64))

    def lin(fan_in, fan_out, bias=True):
        bound = 1.0 / (fan_in ** 0.5)
        w = jax.random.uniform(next(keys), (fan_in, fan_out), jnp.float32, -bound, bound)
        b = (jax.random.uniform(next(keys), (1, fan_out), jnp.float32, -bound, bound)
             if bias else None)
        return w, b

    p = {}
    p["ip_w"], p["ip_b"] = lin(d_model, d_ff)

    ff1_w, ff1_b, ff2_w, ff2_b, ln_g, ln_b, gate_w = [], [], [], [], [], [], []
    for _ in range(n_layers):
        w, b = lin(d_ff, 2 * d_ff); ff1_w.append(w); ff1_b.append(b)
        w, b = lin(2 * d_ff, d_ff); ff2_w.append(w); ff2_b.append(b)
        ln_g.append(1.0 + 0.1 * jax.random.normal(next(keys), (1, d_ff), jnp.float32))
        ln_b.append(0.05 * jax.random.normal(next(keys), (1, d_ff), jnp.float32))
        w, _ = lin(d_ff, 1, bias=False)
        gate_w.append(w.T)                      # (1, d_ff)
    p["ff1_w"] = jnp.stack(ff1_w); p["ff1_b"] = jnp.stack(ff1_b)
    p["ff2_w"] = jnp.stack(ff2_w); p["ff2_b"] = jnp.stack(ff2_b)
    p["ln_g"] = jnp.stack(ln_g);   p["ln_b"] = jnp.stack(ln_b)
    p["gate_w"] = jnp.stack(gate_w)             # (L, 1, d_ff)

    p["mq_w"], p["mq_b"] = lin(d_model, d_model)
    p["mk_w"], p["mk_b"] = lin(d_ff, d_model)
    p["mv_w"], p["mv_b"] = lin(d_ff, d_model)
    p["op_w"], p["op_b"] = lin(d_ff, d_model)
    p["fn_g"] = 1.0 + 0.1 * jax.random.normal(next(keys), (1, d_model), jnp.float32)
    p["fn_b"] = 0.05 * jax.random.normal(next(keys), (1, d_model), jnp.float32)
    return p


if __name__ == "__main__":
    B, S, d_model, d_ff, n_layers, M = 2, 8, 32, 32, 2, 4
    key = jax.random.PRNGKey(0)
    kp, kx, km = jax.random.split(key, 3)

    params = init_params(kp, d_model, d_ff, n_layers)
    packed = pack_params(params)                 # one-time, load-time packing
    x = jax.random.normal(kx, (B, S, d_model), jnp.float32)
    memory = jax.random.normal(km, (B, M, d_ff), jnp.float32)

    # Memory path + no-memory path
    out_m, newmem_m = expert_forward(x, packed, memory)
    out_n, newmem_n = expert_forward(x, packed, None)
    jax.block_until_ready((out_m, newmem_m, out_n, newmem_n))

    # Reference with the kernel's matmul numerics (bf16 operands, f32 accumulate):
    # tight tolerance. Full-f32 reference (true module semantics): loose tolerance
    # accounting for single-pass bf16 MXU inputs.
    results = [((out_m, newmem_m), memory), ((out_n, newmem_n), None)]
    for (g_out, g_mem), mem_arg in results:
        rb_out, rb_mem = expert_reference(x, params, mem_arg, bf16_matmuls=True)
        rf_out, rf_mem = expert_reference(x, params, mem_arg, bf16_matmuls=False)
        for got, ref in ((g_out, rb_out), (g_mem, rb_mem)):
            err = float(jnp.max(jnp.abs(got - ref)))
            assert jnp.allclose(got, ref, atol=3e-3, rtol=3e-3), \
                f"bf16-matmul reference mismatch, max abs err={err}"
        for got, ref in ((g_out, rf_out), (g_mem, rf_mem)):
            err = float(jnp.max(jnp.abs(got - ref)))
            assert jnp.allclose(got, ref, atol=5e-2, rtol=5e-2), \
                f"f32 reference mismatch, max abs err={err}"

    print("KERNEL_OK")
</pallas_src>

<mosaic_0001>
module attributes {stable_mosaic.version = 11 : i64} {
  func.func @_expert_kernel(%arg0: i32, %arg1: memref<16x128xf32, #tpu.memory_space<vmem>>, %arg2: memref<128x128xbf16, #tpu.memory_space<vmem>>, %arg3: memref<1x128xf32, #tpu.memory_space<vmem>>, %arg4: memref<2x128x128xbf16, #tpu.memory_space<vmem>>, %arg5: memref<2x1x128xf32, #tpu.memory_space<vmem>>, %arg6: memref<2x128x128xbf16, #tpu.memory_space<vmem>>, %arg7: memref<2x1x128xf32, #tpu.memory_space<vmem>>, %arg8: memref<2x1x128xf32, #tpu.memory_space<vmem>>, %arg9: memref<2x1x128xf32, #tpu.memory_space<vmem>>, %arg10: memref<128x128xbf16, #tpu.memory_space<vmem>>, %arg11: memref<1x128xf32, #tpu.memory_space<vmem>>, %arg12: memref<128x256xbf16, #tpu.memory_space<vmem>>, %arg13: memref<1x256xf32, #tpu.memory_space<vmem>>, %arg14: memref<128x128xbf16, #tpu.memory_space<vmem>>, %arg15: memref<1x128xf32, #tpu.memory_space<vmem>>, %arg16: memref<1x128xf32, #tpu.memory_space<vmem>>, %arg17: memref<1x128xf32, #tpu.memory_space<vmem>>, %arg18: memref<16x128xf32, #tpu.memory_space<vmem>>, %arg19: memref<2x1x128xf32, #tpu.memory_space<vmem>>) attributes {dimension_semantics = [#tpu.dimension_semantics<arbitrary>], iteration_bounds = array<i64: 1>, scalar_prefetch = 0 : i64, scratch_operands = 0 : i64, tpu.core_type = #tpu.core_type<tc>, window_params = [{pipeline_mode = #tpu.pipeline_mode<synchronous>, transform_indices = @transform_0, window_bounds = array<i64: 16, 128>}, {pipeline_mode = #tpu.pipeline_mode<synchronous>, transform_indices = @transform_1, window_bounds = array<i64: 128, 128>}, {pipeline_mode = #tpu.pipeline_mode<synchronous>, transform_indices = @transform_2, window_bounds = array<i64: 1, 128>}, {pipeline_mode = #tpu.pipeline_mode<synchronous>, transform_indices = @transform_3, window_bounds = array<i64: 2, 128, 128>}, {pipeline_mode = #tpu.pipeline_mode<synchronous>, transform_indices = @transform_4, window_bounds = array<i64: 2, 1, 128>}, {pipeline_mode = #tpu.pipeline_mode<synchronous>, transform_indices = @transform_5, window_bounds = array<i64: 2, 128, 128>}, {pipeline_mode = #tpu.pipeline_mode<synchronous>, transform_indices = @transform_6, window_bounds = array<i64: 2, 1, 128>}, {pipeline_mode = #tpu.pipeline_mode<synchronous>, transform_indices = @transform_7, window_bounds = array<i64: 2, 1, 128>}, {pipeline_mode = #tpu.pipeline_mode<synchronous>, transform_indices = @transform_8, window_bounds = array<i64: 2, 1, 128>}, {pipeline_mode = #tpu.pipeline_mode<synchronous>, transform_indices = @transform_9, window_bounds = array<i64: 128, 128>}, {pipeline_mode = #tpu.pipeline_mode<synchronous>, transform_indices = @transform_10, window_bounds = array<i64: 1, 128>}, {pipeline_mode = #tpu.pipeline_mode<synchronous>, transform_indices = @transform_11, window_bounds = array<i64: 128, 256>}, {pipeline_mode = #tpu.pipeline_mode<synchronous>, transform_indices = @transform_12, window_bounds = array<i64: 1, 256>}, {pipeline_mode = #tpu.pipeline_mode<synchronous>, transform_indices = @transform_13, window_bounds = array<i64: 128, 128>}, {pipeline_mode = #tpu.pipeline_mode<synchronous>, transform_indices = @transform_14, window_bounds = array<i64: 1, 128>}, {pipeline_mode = #tpu.pipeline_mode<synchronous>, transform_indices = @transform_15, window_bounds = array<i64: 1, 128>}, {pipeline_mode = #tpu.pipeline_mode<synchronous>, transform_indices = @transform_16, window_bounds = array<i64: 1, 128>}, {pipeline_mode = #tpu.pipeline_mode<synchronous>, transform_indices = @transform_17, window_bounds = array<i64: 16, 128>}, {pipeline_mode = #tpu.pipeline_mode<synchronous>, transform_indices = @transform_18, window_bounds = array<i64: 2, 1, 128>}]} {
    %c0 = arith.constant 0 : index
    %c0_0 = arith.constant 0 : index
    %0 = vector.load %arg1[%c0, %c0_0] : memref<16x128xf32, #tpu.memory_space<vmem>>, vector<16x128xf32>
    %1 = arith.truncf %0 : vector<16x128xf32> to vector<16x128xbf16>
    %c0_1 = arith.constant 0 : index
    %c0_2 = arith.constant 0 : index
    %2 = vector.load %arg2[%c0_1, %c0_2] : memref<128x128xbf16, #tpu.memory_space<vmem>>, vector<128x128xbf16>
    %cst = arith.constant dense<0.000000e+00> : vector<16x128xf32>
    %3 = tpu.matmul %1, %2, %cst {dimension_numbers = #tpu.dot_dimension_numbers<[1], [0], [0], [1], [0, 0, 1, 1], [], []>} : vector<16x128xbf16>, vector<128x128xbf16>, vector<16x128xf32> -> vector<16x128xf32>
    %c0_3 = arith.constant 0 : index
    %c0_4 = arith.constant 0 : index
    %4 = vector.load %arg3[%c0_3, %c0_4] : memref<1x128xf32, #tpu.memory_space<vmem>>, vector<1x128xf32>
    %5 = vector.broadcast %4 : vector<1x128xf32> to vector<16x128xf32>
    %6 = arith.addf %3, %5 : vector<16x128xf32>
    %7 = arith.truncf %6 : vector<16x128xf32> to vector<16x128xbf16>
    %c0_5 = arith.constant 0 : index
    %c0_6 = arith.constant 0 : index
    %c0_7 = arith.constant 0 : index
    %8 = vector.load %arg4[%c0_5, %c0_6, %c0_7] : memref<2x128x128xbf16, #tpu.memory_space<vmem>>, vector<1x128x128xbf16>
    %9 = vector.shape_cast %8 : vector<1x128x128xbf16> to vector<128x128xbf16>
    %cst_8 = arith.constant dense<0.000000e+00> : vector<16x128xf32>
    %10 = tpu.matmul %7, %9, %cst_8 {dimension_numbers = #tpu.dot_dimension_numbers<[1], [0], [0], [1], [0, 0, 1, 1], [], []>} : vector<16x128xbf16>, vector<128x128xbf16>, vector<16x128xf32> -> vector<16x128xf32>
    %c0_9 = arith.constant 0 : index
    %c0_10 = arith.constant 0 : index
    %c0_11 = arith.constant 0 : index
    %11 = vector.load %arg5[%c0_9, %c0_10, %c0_11] : memref<2x1x128xf32, #tpu.memory_space<vmem>>, vector<1x1x128xf32>
    %12 = vector.shape_cast %11 : vector<1x1x128xf32> to vector<1x128xf32>
    %13 = vector.broadcast %12 : vector<1x128xf32> to vector<16x128xf32>
    %14 = arith.addf %10, %13 : vector<16x128xf32>
    %15 = vector.extract_strided_slice %14 {offsets = [0, 64], sizes = [16, 1], strides = [1, 1]} : vector<16x128xf32> to vector<16x1xf32>
    %16 = arith.negf %15 : vector<16x1xf32>
    %17 = math.exp %16 : vector<16x1xf32>
    %cst_12 = arith.constant 1.000000e+00 : f32
    %18 = vector.broadcast %cst_12 : f32 to vector<16x1xf32>
    %19 = arith.addf %18, %17 : vector<16x1xf32>
    %20 = arith.divf %18, %19 : vector<16x1xf32>
    %cst_13 = arith.constant 5.000000e-01 : f32
    %21 = vector.broadcast %cst_13 : f32 to vector<16x128xf32>
    %22 = arith.mulf %21, %14 : vector<16x128xf32>
    %cst_14 = arith.constant 0.707106769 : f32
    %23 = vector.broadcast %cst_14 : f32 to vector<16x128xf32>
    %24 = arith.mulf %14, %23 : vector<16x128xf32>
    %25 = math.erf %24 : vector<16x128xf32>
    %cst_15 = arith.constant 1.000000e+00 : f32
    %26 = vector.broadcast %cst_15 : f32 to vector<16x128xf32>
    %27 = arith.addf %26, %25 : vector<16x128xf32>
    %28 = arith.mulf %22, %27 : vector<16x128xf32>
    %29 = arith.truncf %28 : vector<16x128xf32> to vector<16x128xbf16>
    %c0_16 = arith.constant 0 : index
    %c0_17 = arith.constant 0 : index
    %c0_18 = arith.constant 0 : index
    %30 = vector.load %arg6[%c0_16, %c0_17, %c0_18] : memref<2x128x128xbf16, #tpu.memory_space<vmem>>, vector<1x128x128xbf16>
    %31 = vector.shape_cast %30 : vector<1x128x128xbf16> to vector<128x128xbf16>
    %cst_19 = arith.constant dense<0.000000e+00> : vector<16x128xf32>
    %32 = tpu.matmul %29, %31, %cst_19 {dimension_numbers = #tpu.dot_dimension_numbers<[1], [0], [0], [1], [0, 0, 1, 1], [], []>} : vector<16x128xbf16>, vector<128x128xbf16>, vector<16x128xf32> -> vector<16x128xf32>
    %c0_20 = arith.constant 0 : index
    %c0_21 = arith.constant 0 : index
    %c0_22 = arith.constant 0 : index
    %33 = vector.load %arg7[%c0_20, %c0_21, %c0_22] : memref<2x1x128xf32, #tpu.memory_space<vmem>>, vector<1x1x128xf32>
    %34 = vector.shape_cast %33 : vector<1x1x128xf32> to vector<1x128xf32>
    %35 = vector.broadcast %34 : vector<1x128xf32> to vector<16x128xf32>
    %36 = arith.addf %32, %35 : vector<16x128xf32>
    %c0_23 = arith.constant 0 : index
    %c0_24 = arith.constant 0 : index
    %c0_25 = arith.constant 0 : index
    %37 = vector.load %arg8[%c0_23, %c0_24, %c0_25] : memref<2x1x128xf32, #tpu.memory_space<vmem>>, vector<1x1x128xf32>
    %38 = vector.shape_cast %37 : vector<1x1x128xf32> to vector<1x128xf32>
    %c0_26 = arith.constant 0 : index
    %c0_27 = arith.constant 0 : index
    %c0_28 = arith.constant 0 : index
    %39 = vector.load %arg9[%c0_26, %c0_27, %c0_28] : memref<2x1x128xf32, #tpu.memory_space<vmem>>, vector<1x1x128xf32>
    %40 = vector.shape_cast %39 : vector<1x1x128xf32> to vector<1x128xf32>
    %cst_29 = arith.constant dense<0.000000e+00> : vector<16xf32>
    %41 = vector.multi_reduction <add>, %36, %cst_29 [1] : vector<16x128xf32> to vector<16xf32>
    %42 = vector.shape_cast %41 : vector<16xf32> to vector<16x1xf32>
    %cst_30 = arith.constant 3.125000e-02 : f32
    %43 = vector.broadcast %cst_30 : f32 to vector<16x1xf32>
    %44 = arith.mulf %42, %43 : vector<16x1xf32>
    %45 = arith.mulf %36, %36 : vector<16x128xf32>
    %cst_31 = arith.constant dense<0.000000e+00> : vector<16xf32>
    %46 = vector.multi_reduction <add>, %45, %cst_31 [1] : vector<16x128xf32> to vector<16xf32>
    %47 = vector.shape_cast %46 : vector<16xf32> to vector<16x1xf32>
    %cst_32 = arith.constant 3.125000e-02 : f32
    %48 = vector.broadcast %cst_32 : f32 to vector<16x1xf32>
    %49 = arith.mulf %47, %48 : vector<16x1xf32>
    %50 = arith.mulf %44, %44 : vector<16x1xf32>
    %51 = arith.subf %49, %50 : vector<16x1xf32>
    %52 = vector.broadcast %44 : vector<16x1xf32> to vector<16x128xf32>
    %53 = arith.subf %36, %52 : vector<16x128xf32>
    %cst_33 = arith.constant 9.99999974E-6 : f32
    %54 = vector.broadcast %cst_33 : f32 to vector<16x1xf32>
    %55 = arith.addf %51, %54 : vector<16x1xf32>
    %56 = math.rsqrt %55 : vector<16x1xf32>
    %57 = vector.broadcast %56 : vector<16x1xf32> to vector<16x128xf32>
    %58 = arith.mulf %53, %57 : vector<16x128xf32>
    %59 = vector.broadcast %38 : vector<1x128xf32> to vector<16x128xf32>
    %60 = arith.mulf %58, %59 : vector<16x128xf32>
    %61 = vector.broadcast %40 : vector<1x128xf32> to vector<16x128xf32>
    %62 = arith.addf %60, %61 : vector<16x128xf32>
    %63 = vector.broadcast %20 : vector<16x1xf32> to vector<16x128xf32>
    %64 = arith.mulf %63, %62 : vector<16x128xf32>
    %65 = arith.addf %6, %64 : vector<16x128xf32>
    %66 = arith.truncf %65 : vector<16x128xf32> to vector<16x128xbf16>
    %c1 = arith.constant 1 : index
    %c0_34 = arith.constant 0 : index
    %c0_35 = arith.constant 0 : index
    %67 = vector.load %arg4[%c1, %c0_34, %c0_35] : memref<2x128x128xbf16, #tpu.memory_space<vmem>>, vector<1x128x128xbf16>
    %68 = vector.shape_cast %67 : vector<1x128x128xbf16> to vector<128x128xbf16>
    %cst_36 = arith.constant dense<0.000000e+00> : vector<16x128xf32>
    %69 = tpu.matmul %66, %68, %cst_36 {dimension_numbers = #tpu.dot_dimension_numbers<[1], [0], [0], [1], [0, 0, 1, 1], [], []>} : vector<16x128xbf16>, vector<128x128xbf16>, vector<16x128xf32> -> vector<16x128xf32>
    %c1_37 = arith.constant 1 : index
    %c0_38 = arith.constant 0 : index
    %c0_39 = arith.constant 0 : index
    %70 = vector.load %arg5[%c1_37, %c0_38, %c0_39] : memref<2x1x128xf32, #tpu.memory_space<vmem>>, vector<1x1x128xf32>
    %71 = vector.shape_cast %70 : vector<1x1x128xf32> to vector<1x128xf32>
    %72 = vector.broadcast %71 : vector<1x128xf32> to vector<16x128xf32>
    %73 = arith.addf %69, %72 : vector<16x128xf32>
    %74 = vector.extract_strided_slice %73 {offsets = [0, 64], sizes = [16, 1], strides = [1, 1]} : vector<16x128xf32> to vector<16x1xf32>
    %75 = arith.negf %74 : vector<16x1xf32>
    %76 = math.exp %75 : vector<16x1xf32>
    %cst_40 = arith.constant 1.000000e+00 : f32
    %77 = vector.broadcast %cst_40 : f32 to vector<16x1xf32>
    %78 = arith.addf %77, %76 : vector<16x1xf32>
    %79 = arith.divf %77, %78 : vector<16x1xf32>
    %cst_41 = arith.constant 5.000000e-01 : f32
    %80 = vector.broadcast %cst_41 : f32 to vector<16x128xf32>
    %81 = arith.mulf %80, %73 : vector<16x128xf32>
    %cst_42 = arith.constant 0.707106769 : f32
    %82 = vector.broadcast %cst_42 : f32 to vector<16x128xf32>
    %83 = arith.mulf %73, %82 : vector<16x128xf32>
    %84 = math.erf %83 : vector<16x128xf32>
    %cst_43 = arith.constant 1.000000e+00 : f32
    %85 = vector.broadcast %cst_43 : f32 to vector<16x128xf32>
    %86 = arith.addf %85, %84 : vector<16x128xf32>
    %87 = arith.mulf %81, %86 : vector<16x128xf32>
    %88 = arith.truncf %87 : vector<16x128xf32> to vector<16x128xbf16>
    %c1_44 = arith.constant 1 : index
    %c0_45 = arith.constant 0 : index
    %c0_46 = arith.constant 0 : index
    %89 = vector.load %arg6[%c1_44, %c0_45, %c0_46] : memref<2x128x128xbf16, #tpu.memory_space<vmem>>, vector<1x128x128xbf16>
    %90 = vector.shape_cast %89 : vector<1x128x128xbf16> to vector<128x128xbf16>
    %cst_47 = arith.constant dense<0.000000e+00> : vector<16x128xf32>
    %91 = tpu.matmul %88, %90, %cst_47 {dimension_numbers = #tpu.dot_dimension_numbers<[1], [0], [0], [1], [0, 0, 1, 1], [], []>} : vector<16x128xbf16>, vector<128x128xbf16>, vector<16x128xf32> -> vector<16x128xf32>
    %c1_48 = arith.constant 1 : index
    %c0_49 = arith.constant 0 : index
    %c0_50 = arith.constant 0 : index
    %92 = vector.load %arg7[%c1_48, %c0_49, %c0_50] : memref<2x1x128xf32, #tpu.memory_space<vmem>>, vector<1x1x128xf32>
    %93 = vector.shape_cast %92 : vector<1x1x128xf32> to vector<1x128xf32>
    %94 = vector.broadcast %93 : vector<1x128xf32> to vector<16x128xf32>
    %95 = arith.addf %91, %94 : vector<16x128xf32>
    %c1_51 = arith.constant 1 : index
    %c0_52 = arith.constant 0 : index
    %c0_53 = arith.constant 0 : index
    %96 = vector.load %arg8[%c1_51, %c0_52, %c0_53] : memref<2x1x128xf32, #tpu.memory_space<vmem>>, vector<1x1x128xf32>
    %97 = vector.shape_cast %96 : vector<1x1x128xf32> to vector<1x128xf32>
    %c1_54 = arith.constant 1 : index
    %c0_55 = arith.constant 0 : index
    %c0_56 = arith.constant 0 : index
    %98 = vector.load %arg9[%c1_54, %c0_55, %c0_56] : memref<2x1x128xf32, #tpu.memory_space<vmem>>, vector<1x1x128xf32>
    %99 = vector.shape_cast %98 : vector<1x1x128xf32> to vector<1x128xf32>
    %cst_57 = arith.constant dense<0.000000e+00> : vector<16xf32>
    %100 = vector.multi_reduction <add>, %95, %cst_57 [1] : vector<16x128xf32> to vector<16xf32>
    %101 = vector.shape_cast %100 : vector<16xf32> to vector<16x1xf32>
    %cst_58 = arith.constant 3.125000e-02 : f32
    %102 = vector.broadcast %cst_58 : f32 to vector<16x1xf32>
    %103 = arith.mulf %101, %102 : vector<16x1xf32>
    %104 = arith.mulf %95, %95 : vector<16x128xf32>
    %cst_59 = arith.constant dense<0.000000e+00> : vector<16xf32>
    %105 = vector.multi_reduction <add>, %104, %cst_59 [1] : vector<16x128xf32> to vector<16xf32>
    %106 = vector.shape_cast %105 : vector<16xf32> to vector<16x1xf32>
    %cst_60 = arith.constant 3.125000e-02 : f32
    %107 = vector.broadcast %cst_60 : f32 to vector<16x1xf32>
    %108 = arith.mulf %106, %107 : vector<16x1xf32>
    %109 = arith.mulf %103, %103 : vector<16x1xf32>
    %110 = arith.subf %108, %109 : vector<16x1xf32>
    %111 = vector.broadcast %103 : vector<16x1xf32> to vector<16x128xf32>
    %112 = arith.subf %95, %111 : vector<16x128xf32>
    %cst_61 = arith.constant 9.99999974E-6 : f32
    %113 = vector.broadcast %cst_61 : f32 to vector<16x1xf32>
    %114 = arith.addf %110, %113 : vector<16x1xf32>
    %115 = math.rsqrt %114 : vector<16x1xf32>
    %116 = vector.broadcast %115 : vector<16x1xf32> to vector<16x128xf32>
    %117 = arith.mulf %112, %116 : vector<16x128xf32>
    %118 = vector.broadcast %97 : vector<1x128xf32> to vector<16x128xf32>
    %119 = arith.mulf %117, %118 : vector<16x128xf32>
    %120 = vector.broadcast %99 : vector<1x128xf32> to vector<16x128xf32>
    %121 = arith.addf %119, %120 : vector<16x128xf32>
    %122 = vector.broadcast %79 : vector<16x1xf32> to vector<16x128xf32>
    %123 = arith.mulf %122, %121 : vector<16x128xf32>
    %124 = arith.addf %65, %123 : vector<16x128xf32>
    %125 = vector.shape_cast %124 : vector<16x128xf32> to vector<2x8x128xf32>
    %126 = vector.extract_strided_slice %125 {offsets = [0, 7, 0], sizes = [2, 1, 128], strides = [1, 1, 1]} : vector<2x8x128xf32> to vector<2x1x128xf32>
    %c0_62 = arith.constant 0 : index
    %c0_63 = arith.constant 0 : index
    %c0_64 = arith.constant 0 : index
    %127 = vector.load %arg19[%c0_62, %c0_63, %c0_64] : memref<2x1x128xf32, #tpu.memory_space<vmem>>, vector<2x1x128xf32>
    tpu.vector_store %arg19[%c0_62, %c0_63, %c0_64], %126 {strides = array<i32>} : memref<2x1x128xf32, #tpu.memory_space<vmem>>, vector<2x1x128xf32>,
    %128 = arith.truncf %0 : vector<16x128xf32> to vector<16x128xbf16>
    %c0_65 = arith.constant 0 : index
    %c0_66 = arith.constant 0 : index
    %129 = vector.load %arg10[%c0_65, %c0_66] : memref<128x128xbf16, #tpu.memory_space<vmem>>, vector<128x128xbf16>
    %cst_67 = arith.constant dense<0.000000e+00> : vector<16x128xf32>
    %130 = tpu.matmul %128, %129, %cst_67 {dimension_numbers = #tpu.dot_dimension_numbers<[1], [0], [0], [1], [0, 0, 1, 1], [], []>} : vector<16x128xbf16>, vector<128x128xbf16>, vector<16x128xf32> -> vector<16x128xf32>
    %c0_68 = arith.constant 0 : index
    %c0_69 = arith.constant 0 : index
    %131 = vector.load %arg11[%c0_68, %c0_69] : memref<1x128xf32, #tpu.memory_space<vmem>>, vector<1x128xf32>
    %132 = vector.broadcast %131 : vector<1x128xf32> to vector<16x128xf32>
    %133 = arith.addf %130, %132 : vector<16x128xf32>
    %134 = arith.truncf %124 : vector<16x128xf32> to vector<16x128xbf16>
    %c0_70 = arith.constant 0 : index
    %c0_71 = arith.constant 0 : index
    %135 = vector.load %arg12[%c0_70, %c0_71] : memref<128x256xbf16, #tpu.memory_space<vmem>>, vector<128x256xbf16>
    %cst_72 = arith.constant dense<0.000000e+00> : vector<16x256xf32>
    %136 = tpu.matmul %134, %135, %cst_72 {dimension_numbers = #tpu.dot_dimension_numbers<[1], [0], [0], [1], [0, 0, 1, 1], [], []>} : vector<16x128xbf16>, vector<128x256xbf16>, vector<16x256xf32> -> vector<16x256xf32>
    %c0_73 = arith.constant 0 : index
    %c0_74 = arith.constant 0 : index
    %137 = vector.load %arg13[%c0_73, %c0_74] : memref<1x256xf32, #tpu.memory_space<vmem>>, vector<1x256xf32>
    %138 = vector.broadcast %137 : vector<1x256xf32> to vector<16x256xf32>
    %139 = arith.addf %136, %138 : vector<16x256xf32>
    %140 = vector.extract_strided_slice %139 {offsets = [0, 0], sizes = [16, 128], strides = [1, 1]} : vector<16x256xf32> to vector<16x128xf32>
    %141 = vector.extract_strided_slice %139 {offsets = [0, 128], sizes = [16, 128], strides = [1, 1]} : vector<16x256xf32> to vector<16x128xf32>
    %142 = vector.shape_cast %133 : vector<16x128xf32> to vector<2x8x128xf32>
    %143 = vector.shape_cast %140 : vector<16x128xf32> to vector<2x8x128xf32>
    %144 = vector.shape_cast %141 : vector<16x128xf32> to vector<2x8x128xf32>
    %145 = arith.truncf %142 : vector<2x8x128xf32> to vector<2x8x128xbf16>
    %146 = arith.truncf %143 : vector<2x8x128xf32> to vector<2x8x128xbf16>
    %cst_75 = arith.constant dense<0.000000e+00> : vector<2x8x8xf32>
    %147 = tpu.matmul %145, %146, %cst_75 {dimension_numbers = #tpu.dot_dimension_numbers<[2], [2], [1], [1], [0, 0, 0, 1, 1, 1], [0], [0]>} : vector<2x8x128xbf16>, vector<2x8x128xbf16>, vector<2x8x8xf32> -> vector<2x8x8xf32>
    %cst_76 = arith.constant 0.176776692 : f32
    %148 = vector.broadcast %cst_76 : f32 to vector<2x8x8xf32>
    %149 = arith.mulf %147, %148 : vector<2x8x8xf32>
    %cst_77 = arith.constant dense<0xFF800000> : vector<2x8xf32>
    %150 = vector.multi_reduction <maximumf>, %149, %cst_77 [2] : vector<2x8x8xf32> to vector<2x8xf32>
    %151 = vector.shape_cast %150 : vector<2x8xf32> to vector<2x8x1xf32>
    %152 = vector.broadcast %151 : vector<2x8x1xf32> to vector<2x8x8xf32>
    %153 = arith.subf %149, %152 : vector<2x8x8xf32>
    %154 = math.exp %153 : vector<2x8x8xf32>
    %cst_78 = arith.constant dense<0.000000e+00> : vector<2x8xf32>
    %155 = vector.multi_reduction <add>, %154, %cst_78 [2] : vector<2x8x8xf32> to vector<2x8xf32>
    %156 = vector.shape_cast %155 : vector<2x8xf32> to vector<2x8x1xf32>
    %157 = tpu.reciprocal %156 : vector<2x8x1xf32> -> vector<2x8x1xf32>
    %158 = vector.broadcast %157 : vector<2x8x1xf32> to vector<2x8x8xf32>
    %159 = arith.mulf %154, %158 : vector<2x8x8xf32>
    %160 = arith.truncf %159 : vector<2x8x8xf32> to vector<2x8x8xbf16>
    %161 = arith.truncf %144 : vector<2x8x128xf32> to vector<2x8x128xbf16>
    %cst_79 = arith.constant dense<0.000000e+00> : vector<2x8x128xf32>
    %162 = tpu.matmul %160, %161, %cst_79 {dimension_numbers = #tpu.dot_dimension_numbers<[2], [1], [1], [2], [0, 0, 0, 1, 1, 2], [0], [0]>} : vector<2x8x8xbf16>, vector<2x8x128xbf16>, vector<2x8x128xf32> -> vector<2x8x128xf32>
    %163 = vector.shape_cast %162 : vector<2x8x128xf32> to vector<16x128xf32>
    %164 = arith.addf %124, %163 : vector<16x128xf32>
    %165 = arith.truncf %164 : vector<16x128xf32> to vector<16x128xbf16>
    %c0_80 = arith.constant 0 : index
    %c0_81 = arith.constant 0 : index
    %166 = vector.load %arg14[%c0_80, %c0_81] : memref<128x128xbf16, #tpu.memory_space<vmem>>, vector<128x128xbf16>
    %cst_82 = arith.constant dense<0.000000e+00> : vector<16x128xf32>
    %167 = tpu.matmul %165, %166, %cst_82 {dimension_numbers = #tpu.dot_dimension_numbers<[1], [0], [0], [1], [0, 0, 1, 1], [], []>} : vector<16x128xbf16>, vector<128x128xbf16>, vector<16x128xf32> -> vector<16x128xf32>
    %c0_83 = arith.constant 0 : index
    %c0_84 = arith.constant 0 : index
    %168 = vector.load %arg15[%c0_83, %c0_84] : memref<1x128xf32, #tpu.memory_space<vmem>>, vector<1x128xf32>
    %169 = vector.broadcast %168 : vector<1x128xf32> to vector<16x128xf32>
    %170 = arith.addf %167, %169 : vector<16x128xf32>
    %171 = arith.addf %0, %170 : vector<16x128xf32>
    %c0_85 = arith.constant 0 : index
    %c0_86 = arith.constant 0 : index
    %172 = vector.load %arg16[%c0_85, %c0_86] : memref<1x128xf32, #tpu.memory_space<vmem>>, vector<1x128xf32>
    %c0_87 = arith.constant 0 : index
    %c0_88 = arith.constant 0 : index
    %173 = vector.load %arg17[%c0_87, %c0_88] : memref<1x128xf32, #tpu.memory_space<vmem>>, vector<1x128xf32>
    %cst_89 = arith.constant dense<0.000000e+00> : vector<16xf32>
    %174 = vector.multi_reduction <add>, %171, %cst_89 [1] : vector<16x128xf32> to vector<16xf32>
    %175 = vector.shape_cast %174 : vector<16xf32> to vector<16x1xf32>
    %cst_90 = arith.constant 3.125000e-02 : f32
    %176 = vector.broadcast %cst_90 : f32 to vector<16x1xf32>
    %177 = arith.mulf %175, %176 : vector<16x1xf32>
    %178 = arith.mulf %171, %171 : vector<16x128xf32>
    %cst_91 = arith.constant dense<0.000000e+00> : vector<16xf32>
    %179 = vector.multi_reduction <add>, %178, %cst_91 [1] : vector<16x128xf32> to vector<16xf32>
    %180 = vector.shape_cast %179 : vector<16xf32> to vector<16x1xf32>
    %cst_92 = arith.constant 3.125000e-02 : f32
    %181 = vector.broadcast %cst_92 : f32 to vector<16x1xf32>
    %182 = arith.mulf %180, %181 : vector<16x1xf32>
    %183 = arith.mulf %177, %177 : vector<16x1xf32>
    %184 = arith.subf %182, %183 : vector<16x1xf32>
    %185 = vector.broadcast %177 : vector<16x1xf32> to vector<16x128xf32>
    %186 = arith.subf %171, %185 : vector<16x128xf32>
    %cst_93 = arith.constant 9.99999974E-6 : f32
    %187 = vector.broadcast %cst_93 : f32 to vector<16x1xf32>
    %188 = arith.addf %184, %187 : vector<16x1xf32>
    %189 = math.rsqrt %188 : vector<16x1xf32>
    %190 = vector.broadcast %189 : vector<16x1xf32> to vector<16x128xf32>
    %191 = arith.mulf %186, %190 : vector<16x128xf32>
    %192 = vector.broadcast %172 : vector<1x128xf32> to vector<16x128xf32>
    %193 = arith.mulf %191, %192 : vector<16x128xf32>
    %194 = vector.broadcast %173 : vector<1x128xf32> to vector<16x128xf32>
    %195 = arith.addf %193, %194 : vector<16x128xf32>
    %c0_94 = arith.constant 0 : index
    %c0_95 = arith.constant 0 : index
    %196 = vector.load %arg18[%c0_94, %c0_95] : memref<16x128xf32, #tpu.memory_space<vmem>>, vector<16x128xf32>
    tpu.vector_store %arg18[%c0_94, %c0_95], %195 {strides = array<i32>} : memref<16x128xf32, #tpu.memory_space<vmem>>, vector<16x128xf32>,
    return
  }
  func.func @transform_0(%arg0: i32) -> (i32, i32) {
    %c0_i32 = arith.constant 0 : i32
    %c0_i32_0 = arith.constant 0 : i32
    %c0_i32_1 = arith.constant 0 : i32
    return %c0_i32, %c0_i32_0 : i32, i32
  }
  func.func @transform_1(%arg0: i32) -> (i32, i32) {
    %c0_i32 = arith.constant 0 : i32
    %c0_i32_0 = arith.constant 0 : i32
    %c0_i32_1 = arith.constant 0 : i32
    return %c0_i32, %c0_i32_0 : i32, i32
  }
  func.func @transform_2(%arg0: i32) -> (i32, i32) {
    %c0_i32 = arith.constant 0 : i32
    %c0_i32_0 = arith.constant 0 : i32
    %c0_i32_1 = arith.constant 0 : i32
    return %c0_i32, %c0_i32_0 : i32, i32
  }
  func.func @transform_3(%arg0: i32) -> (i32, i32, i32) {
    %c0_i32 = arith.constant 0 : i32
    %c0_i32_0 = arith.constant 0 : i32
    %c0_i32_1 = arith.constant 0 : i32
    %c0_i32_2 = arith.constant 0 : i32
    return %c0_i32, %c0_i32_0, %c0_i32_1 : i32, i32, i32
  }
  func.func @transform_4(%arg0: i32) -> (i32, i32, i32) {
    %c0_i32 = arith.constant 0 : i32
    %c0_i32_0 = arith.constant 0 : i32
    %c0_i32_1 = arith.constant 0 : i32
    %c0_i32_2 = arith.constant 0 : i32
    return %c0_i32, %c0_i32_0, %c0_i32_1 : i32, i32, i32
  }
  func.func @transform_5(%arg0: i32) -> (i32, i32, i32) {
    %c0_i32 = arith.constant 0 : i32
    %c0_i32_0 = arith.constant 0 : i32
    %c0_i32_1 = arith.constant 0 : i32
    %c0_i32_2 = arith.constant 0 : i32
    return %c0_i32, %c0_i32_0, %c0_i32_1 : i32, i32, i32
  }
  func.func @transform_6(%arg0: i32) -> (i32, i32, i32) {
    %c0_i32 = arith.constant 0 : i32
    %c0_i32_0 = arith.constant 0 : i32
    %c0_i32_1 = arith.constant 0 : i32
    %c0_i32_2 = arith.constant 0 : i32
    return %c0_i32, %c0_i32_0, %c0_i32_1 : i32, i32, i32
  }
  func.func @transform_7(%arg0: i32) -> (i32, i32, i32) {
    %c0_i32 = arith.constant 0 : i32
    %c0_i32_0 = arith.constant 0 : i32
    %c0_i32_1 = arith.constant 0 : i32
    %c0_i32_2 = arith.constant 0 : i32
    return %c0_i32, %c0_i32_0, %c0_i32_1 : i32, i32, i32
  }
  func.func @transform_8(%arg0: i32) -> (i32, i32, i32) {
    %c0_i32 = arith.constant 0 : i32
    %c0_i32_0 = arith.constant 0 : i32
    %c0_i32_1 = arith.constant 0 : i32
    %c0_i32_2 = arith.constant 0 : i32
    return %c0_i32, %c0_i32_0, %c0_i32_1 : i32, i32, i32
  }
  func.func @transform_9(%arg0: i32) -> (i32, i32) {
    %c0_i32 = arith.constant 0 : i32
    %c0_i32_0 = arith.constant 0 : i32
    %c0_i32_1 = arith.constant 0 : i32
    return %c0_i32, %c0_i32_0 : i32, i32
  }
  func.func @transform_10(%arg0: i32) -> (i32, i32) {
    %c0_i32 = arith.constant 0 : i32
    %c0_i32_0 = arith.constant 0 : i32
    %c0_i32_1 = arith.constant 0 : i32
    return %c0_i32, %c0_i32_0 : i32, i32
  }
  func.func @transform_11(%arg0: i32) -> (i32, i32) {
    %c0_i32 = arith.constant 0 : i32
    %c0_i32_0 = arith.constant 0 : i32
    %c0_i32_1 = arith.constant 0 : i32
    return %c0_i32, %c0_i32_0 : i32, i32
  }
  func.func @transform_12(%arg0: i32) -> (i32, i32) {
    %c0_i32 = arith.constant 0 : i32
    %c0_i32_0 = arith.constant 0 : i32
    %c0_i32_1 = arith.constant 0 : i32
    return %c0_i32, %c0_i32_0 : i32, i32
  }
  func.func @transform_13(%arg0: i32) -> (i32, i32) {
    %c0_i32 = arith.constant 0 : i32
    %c0_i32_0 = arith.constant 0 : i32
    %c0_i32_1 = arith.constant 0 : i32
    return %c0_i32, %c0_i32_0 : i32, i32
  }
  func.func @transform_14(%arg0: i32) -> (i32, i32) {
    %c0_i32 = arith.constant 0 : i32
    %c0_i32_0 = arith.constant 0 : i32
    %c0_i32_1 = arith.constant 0 : i32
    return %c0_i32, %c0_i32_0 : i32, i32
  }
  func.func @transform_15(%arg0: i32) -> (i32, i32) {
    %c0_i32 = arith.constant 0 : i32
    %c0_i32_0 = arith.constant 0 : i32
    %c0_i32_1 = arith.constant 0 : i32
    return %c0_i32, %c0_i32_0 : i32, i32
  }
  func.func @transform_16(%arg0: i32) -> (i32, i32) {
    %c0_i32 = arith.constant 0 : i32
    %c0_i32_0 = arith.constant 0 : i32
    %c0_i32_1 = arith.constant 0 : i32
    return %c0_i32, %c0_i32_0 : i32, i32
  }
  func.func @transform_17(%arg0: i32) -> (i32, i32) {
    %c0_i32 = arith.constant 0 : i32
    %c0_i32_0 = arith.constant 0 : i32
    %c0_i32_1 = arith.constant 0 : i32
    return %c0_i32, %c0_i32_0 : i32, i32
  }
  func.func @transform_18(%arg0: i32) -> (i32, i32, i32) {
    %c0_i32 = arith.constant 0 : i32
    %c0_i32_0 = arith.constant 0 : i32
    %c0_i32_1 = arith.constant 0 : i32
    %c0_i32_2 = arith.constant 0 : i32
    return %c0_i32, %c0_i32_0, %c0_i32_1 : i32, i32, i32
  }
}

</mosaic_0001>

<llo_original>
// kernel: tpu_custom_call.1
$region0: #{tpu_custom_call.1}
  #allocation0 [shape = 'u32[]', space=smem, size = 0x4, offset = 0x4, fixed_abs, tag = 'smem constant byte address 0x4 - core index']
  #allocation1 [shape = 'u32[144,128]{1,0:T(1,128)}', space=vmem, size = 0x12000, scoped, tag = 'internal scratch']
  %s0 = inlined_call_operand.hbm [shape: f32[16,128], index: 0, kind: input, shape index: {}]
  %s1 = inlined_call_operand.hbm [shape: bf16[128,128], index: 1, kind: input, shape index: {}]
  %s2 = inlined_call_operand.vmem [shape: f32[1,128], index: 2, kind: input, shape index: {}]
  %s3 = inlined_call_operand.hbm [shape: bf16[2,128,128], index: 3, kind: input, shape index: {}]
  %s4 = inlined_call_operand.vmem [shape: f32[2,1,128], index: 4, kind: input, shape index: {}]
  %s5 = inlined_call_operand.hbm [shape: bf16[2,128,128], index: 5, kind: input, shape index: {}]
  %s6 = inlined_call_operand.vmem [shape: f32[2,1,128], index: 6, kind: input, shape index: {}]
  %s7 = inlined_call_operand.vmem [shape: f32[2,1,128], index: 7, kind: input, shape index: {}]
  %s8 = inlined_call_operand.vmem [shape: f32[2,1,128], index: 8, kind: input, shape index: {}]
  %s9 = inlined_call_operand.hbm [shape: bf16[128,128], index: 9, kind: input, shape index: {}]
  %s10 = inlined_call_operand.vmem [shape: f32[1,128], index: 10, kind: input, shape index: {}]
  %s11 = inlined_call_operand.hbm [shape: bf16[128,256], index: 11, kind: input, shape index: {}]
  %s12 = inlined_call_operand.vmem [shape: f32[1,256], index: 12, kind: input, shape index: {}]
  %s13 = inlined_call_operand.hbm [shape: bf16[128,128], index: 13, kind: input, shape index: {}]
  %s14 = inlined_call_operand.vmem [shape: f32[1,128], index: 14, kind: input, shape index: {}]
  %s15 = inlined_call_operand.vmem [shape: f32[1,128], index: 15, kind: input, shape index: {}]
  %s16 = inlined_call_operand.vmem [shape: f32[1,128], index: 16, kind: input, shape index: {}]
  %s17 = inlined_call_operand.hbm [shape: f32[16,128], index: 17, kind: output, shape index: {0}]
  %s18 = inlined_call_operand.hbm [shape: f32[2,1,128], index: 18, kind: output, shape index: {1}]
  %19 = xla_tuple %s17, %s18
  %s20 = sld [smem:[#allocation0]]
  $region114: #{tpu_custom_call.1} parent=0
    _
  %s22 = ssub.s32 1, %s20
  %s23 = scalar_select 0, %s22, %s20
  $region1: #{tpu_custom_call.1} parent=0
    #allocation2 [shape = 'u8[8192]{0}', space=vmem, size = 0x2000, scoped, tag = 'input window, operand 0, single buffered']
    #allocation3 [shape = 's32[1]{0}', space=sflag, size = 0x4, scoped, tag = 'scoped memory for tpu_custom_call.1']
    #allocation4 [shape = 's32[1]{0}', space=sflag, size = 0x4, scoped, tag = 'scoped memory for tpu_custom_call.1']
    #allocation5 [shape = 'u8[32768]{0}', space=vmem, size = 0x8000, scoped, tag = 'input window, operand 1, single buffered']
    #allocation6 [shape = 's32[1]{0}', space=sflag, size = 0x4, scoped, tag = 'scoped memory for tpu_custom_call.1']
    #allocation7 [shape = 'u8[65536]{0}', space=vmem, size = 0x10000, scoped, tag = 'input window, operand 3, single buffered']
    #allocation8 [shape = 'u8[65536]{0}', space=vmem, size = 0x10000, scoped, tag = 'input window, operand 5, single buffered']
    #allocation9 [shape = 's32[1]{0}', space=sflag, size = 0x4, scoped, tag = 'scoped memory for tpu_custom_call.1']
    #allocation10 [shape = 'u8[32768]{0}', space=vmem, size = 0x8000, scoped, tag = 'input window, operand 9, single buffered']
    #allocation11 [shape = 'u8[65536]{0}', space=vmem, size = 0x10000, scoped, tag = 'input window, operand 11, single buffered']
    #allocation12 [shape = 's32[1]{0}', space=sflag, size = 0x4, scoped, tag = 'scoped memory for tpu_custom_call.1']
    #allocation13 [shape = 'u8[32768]{0}', space=vmem, size = 0x8000, scoped, tag = 'input window, operand 13, single buffered']
    #allocation14 [shape = 'u8[8192]{0}', space=vmem, size = 0x2000, scoped, tag = 'output window, operand 0, single buffered']
    #allocation15 [shape = 'u8[1024]{0}', space=vmem, size = 0x400, scoped, tag = 'output window, operand 1, single buffered']
    #allocation16 [shape = 's32[1]{0}', space=sflag, size = 0x4, scoped, tag = 'scoped memory for tpu_custom_call.1']
    %24 = vsyncpa [#allocation3], 0
    %25 = vsyncpa [#allocation6], 0
    %26 = vsyncpa [#allocation9], 0
    %27 = vsyncpa [#allocation12], 0
    %28 = vsyncpa [#allocation4], 0
    %29 = vsyncpa [#allocation16], 0
    // Predicated region
    $region2: #{tpu_custom_call.1} parent=1 // pred_check
      _
    $region3: #{tpu_custom_call.1} parent=1 // pred_check_branch
      %31 = sbr.rel (0) target = $region5
    $region4: #{tpu_custom_call.1} parent=1 // pred_region
      %s33 = ssub.s32 256, 256
      %34 = vsyncadd [#allocation3], %s33
      %s35 = sshll.u32 [#allocation2], 4
      %s36 = int_to_ptr.vmem [resolvable:$true] %s35
      %41 = dma.hbm_to_vmem [thread:$0]  %s0, 256, %s36, [#allocation3], 128, 128, 8
    $region5: #{tpu_custom_call.1} parent=1 // pred_fallthru
      _
    // Predicated region
    $region6: #{tpu_custom_call.1} parent=1 // pred_check
      _
    $region7: #{tpu_custom_call.1} parent=1 // pred_check_branch
      %43 = sbr.rel (0) target = $region9
    $region8: #{tpu_custom_call.1} parent=1 // pred_region
      %s45 = ssub.s32 1024, 1024
      %46 = vsyncadd [#allocation6], %s45
      %s47 = sshll.u32 [#allocation5], 4
      %s48 = int_to_ptr.vmem [resolvable:$true] %s47
      %53 = dma.hbm_to_vmem [thread:$0]  %s1, 1024, %s48, [#allocation6], 64, 64, 4
    $region9: #{tpu_custom_call.1} parent=1 // pred_fallthru
      _
    // Predicated region
    $region10: #{tpu_custom_call.1} parent=1 // pred_check
      _
    $region11: #{tpu_custom_call.1} parent=1 // pred_check_branch
      %55 = sbr.rel (0) target = $region13
    $region12: #{tpu_custom_call.1} parent=1 // pred_region
      _
    $region13: #{tpu_custom_call.1} parent=1 // pred_fallthru
      _
    // Predicated region
    $region14: #{tpu_custom_call.1} parent=1 // pred_check
      _
    $region15: #{tpu_custom_call.1} parent=1 // pred_check_branch
      %57 = sbr.rel (0) target = $region17
    $region16: #{tpu_custom_call.1} parent=1 // pred_region
      %s59 = ssub.s32 2048, 2048
      %60 = vsyncadd [#allocation6], %s59
      %s61 = sshll.u32 [#allocation7], 4
      %s62 = int_to_ptr.vmem [resolvable:$true] %s61
      %67 = dma.hbm_to_vmem [thread:$0]  %s3, 2048, %s62, [#allocation6], 64, 64, 4
    $region17: #{tpu_custom_call.1} parent=1 // pred_fallthru
      _
    // Predicated region
    $region18: #{tpu_custom_call.1} parent=1 // pred_check
      _
    $region19: #{tpu_custom_call.1} parent=1 // pred_check_branch
      %69 = sbr.rel (0) target = $region21
    $region20: #{tpu_custom_call.1} parent=1 // pred_region
      _
    $region21: #{tpu_custom_call.1} parent=1 // pred_fallthru
      _
    // Predicated region
    $region22: #{tpu_custom_call.1} parent=1 // pred_check
      _
    $region23: #{tpu_custom_call.1} parent=1 // pred_check_branch
      %71 = sbr.rel (0) target = $region25
    $region24: #{tpu_custom_call.1} parent=1 // pred_region
      %s73 = ssub.s32 2048, 2048
      %74 = vsyncadd [#allocation9], %s73
      %s75 = sshll.u32 [#allocation8], 4
      %s76 = int_to_ptr.vmem [resolvable:$true] %s75
      %81 = dma.hbm_to_vmem [thread:$0]  %s5, 2048, %s76, [#allocation9], 64, 64, 4
    $region25: #{tpu_custom_call.1} parent=1 // pred_fallthru
      _
    // Predicated region
    $region26: #{tpu_custom_call.1} parent=1 // pred_check
      _
    $region27: #{tpu_custom_call.1} parent=1 // pred_check_branch
      %83 = sbr.rel (0) target = $region29
    $region28: #{tpu_custom_call.1} parent=1 // pred_region
      _
    $region29: #{tpu_custom_call.1} parent=1 // pred_fallthru
      _
    // Predicated region
    $region30: #{tpu_custom_call.1} parent=1 // pred_check
      _
    $region31: #{tpu_custom_call.1} parent=1 // pred_check_branch
      %85 = sbr.rel (0) target = $region33
    $region32: #{tpu_custom_call.1} parent=1 // pred_region
      _
    $region33: #{tpu_custom_call.1} parent=1 // pred_fallthru
      _
    // Predicated region
    $region34: #{tpu_custom_call.1} parent=1 // pred_check
      _
    $region35: #{tpu_custom_call.1} parent=1 // pred_check_branch
      %87 = sbr.rel (0) target = $region37
    $region36: #{tpu_custom_call.1} parent=1 // pred_region
      _
    $region37: #{tpu_custom_call.1} parent=1 // pred_fallthru
      _
    // Predicated region
    $region38: #{tpu_custom_call.1} parent=1 // pred_check
      _
    $region39: #{tpu_custom_call.1} parent=1 // pred_check_branch
      %89 = sbr.rel (0) target = $region41
    $region40: #{tpu_custom_call.1} parent=1 // pred_region
      %s91 = ssub.s32 1024, 1024
      %92 = vsyncadd [#allocation9], %s91
      %s93 = sshll.u32 [#allocation10], 4
      %s94 = int_to_ptr.vmem [resolvable:$true] %s93
      %99 = dma.hbm_to_vmem [thread:$0]  %s9, 1024, %s94, [#allocation9], 64, 64, 4
    $region41: #{tpu_custom_call.1} parent=1 // pred_fallthru
      _
    // Predicated region
    $region42: #{tpu_custom_call.1} parent=1 // pred_check
      _
    $region43: #{tpu_custom_call.1} parent=1 // pred_check_branch
      %101 = sbr.rel (0) target = $region45
    $region44: #{tpu_custom_call.1} parent=1 // pred_region
      _
    $region45: #{tpu_custom_call.1} parent=1 // pred_fallthru
      _
    // Predicated region
    $region46: #{tpu_custom_call.1} parent=1 // pred_check
      _
    $region47: #{tpu_custom_call.1} parent=1 // pred_check_branch
      %103 = sbr.rel (0) target = $region49
    $region48: #{tpu_custom_call.1} parent=1 // pred_region
      %s105 = ssub.s32 2048, 2048
      %106 = vsyncadd [#allocation12], %s105
      %s107 = sshll.u32 [#allocation11], 4
      %s108 = int_to_ptr.vmem [resolvable:$true] %s107
      %113 = dma.hbm_to_vmem [thread:$0]  %s11, 2048, %s108, [#allocation12], 128, 128, 8
    $region49: #{tpu_custom_call.1} parent=1 // pred_fallthru
      _
    // Predicated region
    $region50: #{tpu_custom_call.1} parent=1 // pred_check
      _
    $region51: #{tpu_custom_call.1} parent=1 // pred_check_branch
      %115 = sbr.rel (0) target = $region53
    $region52: #{tpu_custom_call.1} parent=1 // pred_region
      _
    $region53: #{tpu_custom_call.1} parent=1 // pred_fallthru
      _
    // Predicated region
    $region54: #{tpu_custom_call.1} parent=1 // pred_check
      _
    $region55: #{tpu_custom_call.1} parent=1 // pred_check_branch
      %117 = sbr.rel (0) target = $region57
    $region56: #{tpu_custom_call.1} parent=1 // pred_region
      %s119 = ssub.s32 1024, 1024
      %120 = vsyncadd [#allocation12], %s119
      %s121 = sshll.u32 [#allocation13], 4
      %s122 = int_to_ptr.vmem [resolvable:$true] %s121
      %127 = dma.hbm_to_vmem [thread:$0]  %s13, 1024, %s122, [#allocation12], 64, 64, 4
    $region57: #{tpu_custom_call.1} parent=1 // pred_fallthru
      _
    // Predicated region
    $region58: #{tpu_custom_call.1} parent=1 // pred_check
      _
    $region59: #{tpu_custom_call.1} parent=1 // pred_check_branch
      %129 = sbr.rel (0) target = $region61
    $region60: #{tpu_custom_call.1} parent=1 // pred_region
      _
    $region61: #{tpu_custom_call.1} parent=1 // pred_fallthru
      _
    // Predicated region
    $region62: #{tpu_custom_call.1} parent=1 // pred_check
      _
    $region63: #{tpu_custom_call.1} parent=1 // pred_check_branch
      %131 = sbr.rel (0) target = $region65
    $region64: #{tpu_custom_call.1} parent=1 // pred_region
      _
    $region65: #{tpu_custom_call.1} parent=1 // pred_fallthru
      _
    // Predicated region
    $region66: #{tpu_custom_call.1} parent=1 // pred_check
      _
    $region67: #{tpu_custom_call.1} parent=1 // pred_check_branch
      %133 = sbr.rel (0) target = $region69
    $region68: #{tpu_custom_call.1} parent=1 // pred_region
      _
    $region69: #{tpu_custom_call.1} parent=1 // pred_fallthru
      _
    // Predicated region
    $region70: #{tpu_custom_call.1} parent=1 // pred_check
      _
    $region71: #{tpu_custom_call.1} parent=1 // pred_check_branch
      %135 = sbr.rel (0) target = $region73
    $region72: #{tpu_custom_call.1} parent=1 // pred_region
      %136 = dma.done [#allocation3], 256
    $region73: #{tpu_custom_call.1} parent=1 // pred_fallthru
      _
    // Predicated region
    $region74: #{tpu_custom_call.1} parent=1 // pred_check
      _
    $region75: #{tpu_custom_call.1} parent=1 // pred_check_branch
      %138 = sbr.rel (0) target = $region77
    $region76: #{tpu_custom_call.1} parent=1 // pred_region
      %139 = dma.done [#allocation6], 1024
    $region77: #{tpu_custom_call.1} parent=1 // pred_fallthru
      _
    // Predicated region
    $region78: #{tpu_custom_call.1} parent=1 // pred_check
      _
    $region79: #{tpu_custom_call.1} parent=1 // pred_check_branch
      %141 = sbr.rel (0) target = $region81
    $region80: #{tpu_custom_call.1} parent=1 // pred_region
      %142 = dma.done [#allocation6], 2048
    $region81: #{tpu_custom_call.1} parent=1 // pred_fallthru
      _
    // Predicated region
    $region82: #{tpu_custom_call.1} parent=1 // pred_check
      _
    $region83: #{tpu_custom_call.1} parent=1 // pred_check_branch
      %144 = sbr.rel (0) target = $region85
    $region84: #{tpu_custom_call.1} parent=1 // pred_region
      %145 = dma.done [#allocation9], 2048
    $region85: #{tpu_custom_call.1} parent=1 // pred_fallthru
      _
    // Predicated region
    $region86: #{tpu_custom_call.1} parent=1 // pred_check
      _
    $region87: #{tpu_custom_call.1} parent=1 // pred_check_branch
      %147 = sbr.rel (0) target = $region89
    $region88: #{tpu_custom_call.1} parent=1 // pred_region
      %148 = dma.done [#allocation9], 1024
    $region89: #{tpu_custom_call.1} parent=1 // pred_fallthru
      _
    // Predicated region
    $region90: #{tpu_custom_call.1} parent=1 // pred_check
      _
    $region91: #{tpu_custom_call.1} parent=1 // pred_check_branch
      %150 = sbr.rel (0) target = $region93
    $region92: #{tpu_custom_call.1} parent=1 // pred_region
      %151 = dma.done [#allocation12], 2048
    $region93: #{tpu_custom_call.1} parent=1 // pred_fallthru
      _
    // Predicated region
    $region94: #{tpu_custom_call.1} parent=1 // pred_check
      _
    $region95: #{tpu_custom_call.1} parent=1 // pred_check_branch
      %153 = sbr.rel (0) target = $region97
    $region96: #{tpu_custom_call.1} parent=1 // pred_region
      %154 = dma.done [#allocation12], 1024
    $region97: #{tpu_custom_call.1} parent=1 // pred_fallthru
      _
    %v156 = vld [vmem:[#allocation2] sm:$0xff]
    %v157 = vld [vmem:[#allocation2 + $0x8] sm:$0xff]
    %v158 = vpack.c.bf16 %v157, %v156
    %v159 = vld [vmem:[#allocation5] sm:$0xf]
    %v160 = vld [vmem:[#allocation5 + $0x4] sm:$0xf]
    %v161 = vld [vmem:[#allocation5 + $0x8] sm:$0xf]
    %v162 = vld [vmem:[#allocation5 + $0xc] sm:$0xf]
    %v163 = vld [vmem:[#allocation5 + $0x10] sm:$0xf]
    %v164 = vld [vmem:[#allocation5 + $0x14] sm:$0xf]
    %v165 = vld [vmem:[#allocation5 + $0x18] sm:$0xf]
    %v166 = vld [vmem:[#allocation5 + $0x1c] sm:$0xf]
    %v167 = vld [vmem:[#allocation5 + $0x20] sm:$0xf]
    %v168 = vld [vmem:[#allocation5 + $0x24] sm:$0xf]
    %v169 = vld [vmem:[#allocation5 + $0x28] sm:$0xf]
    %v170 = vld [vmem:[#allocation5 + $0x2c] sm:$0xf]
    %v171 = vld [vmem:[#allocation5 + $0x30] sm:$0xf]
    %v172 = vld [vmem:[#allocation5 + $0x34] sm:$0xf]
    %v173 = vld [vmem:[#allocation5 + $0x38] sm:$0xf]
    %v174 = vld [vmem:[#allocation5 + $0x3c] sm:$0xf]
    %v175 = vld [vmem:[%s2] sm:$0x1]
    %v177 = vlaneseq
    %v178 = vshrl.u32 %v177, 7
    %v179 = vsub.s32 0, %v178
    %v180 = vrot.slane %v175, %v179
    %v198 = vunpack.c.l.b16 %v159
    %v199 = vunpack.c.l.b16 %v160
    %v200 = vunpack.c.l.b16 %v161
    %v201 = vunpack.c.l.b16 %v162
    %v202 = vunpack.c.l.b16 %v163
    %v203 = vunpack.c.l.b16 %v164
    %v204 = vunpack.c.l.b16 %v165
    %v205 = vunpack.c.l.b16 %v166
    %v206 = vunpack.c.l.b16 %v167
    %v207 = vunpack.c.l.b16 %v168
    %v208 = vunpack.c.l.b16 %v169
    %v209 = vunpack.c.l.b16 %v170
    %v210 = vunpack.c.l.b16 %v171
    %v211 = vunpack.c.l.b16 %v172
    %v212 = vunpack.c.l.b16 %v173
    %v213 = vunpack.c.l.b16 %v174
    %v214 = vpack.c.b16 %v199, %v198
    %v215 = vpack.c.b16 %v201, %v200
    %v216 = vpack.c.b16 %v203, %v202
    %v217 = vpack.c.b16 %v205, %v204
    %v218 = vpack.c.b16 %v207, %v206
    %v219 = vpack.c.b16 %v209, %v208
    %v220 = vpack.c.b16 %v211, %v210
    %v221 = vpack.c.b16 %v213, %v212
    %230 = vmatprep.subr.bf16.mxu0 0
    %231 = vmatpush1.bf16.msra.mxu0 %v214
    %232 = vmatprep.subr.bf16.mxu0 0
    %233 = vmatpush1.bf16.msra.mxu0 %v215
    %234 = vmatprep.subr.bf16.mxu0 0
    %235 = vmatpush1.bf16.msra.mxu0 %v216
    %236 = vmatprep.subr.bf16.mxu0 0
    %237 = vmatpush1.bf16.msra.mxu0 %v217
    %238 = vmatprep.subr.bf16.mxu0 0
    %239 = vmatpush1.bf16.msra.mxu0 %v218
    %240 = vmatprep.subr.bf16.mxu0 0
    %241 = vmatpush1.bf16.msra.mxu0 %v219
    %242 = vmatprep.subr.bf16.mxu0 0
    %243 = vmatpush1.bf16.msra.mxu0 %v220
    %244 = vmatprep.subr.bf16.mxu0 0
    %245 = vmatpush1.bf16.msra.mxu0 %v221
    %246 = vmatprep.subr.bf16.mxu0 0
    %247 = vmatpush1.bf16.msra.mxu0 0
    %248 = vmatprep.subr.bf16.mxu0 0
    %249 = vmatpush1.bf16.msra.mxu0 0
    %250 = vmatprep.subr.bf16.mxu0 0
    %251 = vmatpush1.bf16.msra.mxu0 0
    %252 = vmatprep.subr.bf16.mxu0 0
    %253 = vmatpush1.bf16.msra.mxu0 0
    %254 = vmatprep.subr.bf16.mxu0 0
    %255 = vmatpush1.bf16.msra.mxu0 0
    %256 = vmatprep.subr.bf16.mxu0 0
    %257 = vmatpush1.bf16.msra.mxu0 0
    %258 = vmatprep.subr.bf16.mxu0 0
    %259 = vmatpush1.bf16.msra.mxu0 0
    %260 = vmatprep.subr.bf16.mxu0 0
    %261 = vmatpush1.bf16.msra.mxu0 0
    %262 = vmatprep.mubr.bf16.mxu0 0
    %263 = vmatmul.mubr.bf16.gmra.mrb[0].mxu0 %v158
    %v264 = vpop.f32.mrb[0].mxu0
    %v265 = vadd.f32 %v180, %v264
    %v266 = vpop.f32.mrb[0].mxu0
    %v267 = vpop.f32.mrb[0].mxu0
    %v268 = vadd.f32 %v180, %v267
    %v269 = vpop.f32.mrb[0].mxu0
    %270 = vdwg.mxu0
    %v271 = vpack.c.bf16 %v268, %v265
    %v272 = vld [vmem:[#allocation7] sm:$0xf]
    %v273 = vld [vmem:[#allocation7 + $0x4] sm:$0xf]
    %v274 = vld [vmem:[#allocation7 + $0x8] sm:$0xf]
    %v275 = vld [vmem:[#allocation7 + $0xc] sm:$0xf]
    %v276 = vld [vmem:[#allocation7 + $0x10] sm:$0xf]
    %v277 = vld [vmem:[#allocation7 + $0x14] sm:$0xf]
    %v278 = vld [vmem:[#allocation7 + $0x18] sm:$0xf]
    %v279 = vld [vmem:[#allocation7 + $0x1c] sm:$0xf]
    %v280 = vld [vmem:[#allocation7 + $0x20] sm:$0xf]
    %v281 = vld [vmem:[#allocation7 + $0x24] sm:$0xf]
    %v282 = vld [vmem:[#allocation7 + $0x28] sm:$0xf]
    %v283 = vld [vmem:[#allocation7 + $0x2c] sm:$0xf]
    %v284 = vld [vmem:[#allocation7 + $0x30] sm:$0xf]
    %v285 = vld [vmem:[#allocation7 + $0x34] sm:$0xf]
    %v286 = vld [vmem:[#allocation7 + $0x38] sm:$0xf]
    %v287 = vld [vmem:[#allocation7 + $0x3c] sm:$0xf]
    %v288 = vld [vmem:[%s4] sm:$0x1]
    %v290 = vlaneseq
    %v291 = vshrl.u32 %v290, 7
    %v292 = vsub.s32 0, %v291
    %v293 = vrot.slane %v288, %v292
    %v311 = vunpack.c.l.b16 %v272
    %v312 = vunpack.c.l.b16 %v273
    %v313 = vunpack.c.l.b16 %v274
    %v314 = vunpack.c.l.b16 %v275
    %v315 = vunpack.c.l.b16 %v276
    %v316 = vunpack.c.l.b16 %v277
    %v317 = vunpack.c.l.b16 %v278
    %v318 = vunpack.c.l.b16 %v279
    %v319 = vunpack.c.l.b16 %v280
    %v320 = vunpack.c.l.b16 %v281
    %v321 = vunpack.c.l.b16 %v282
    %v322 = vunpack.c.l.b16 %v283
    %v323 = vunpack.c.l.b16 %v284
    %v324 = vunpack.c.l.b16 %v285
    %v325 = vunpack.c.l.b16 %v286
    %v326 = vunpack.c.l.b16 %v287
    %v327 = vpack.c.b16 %v312, %v311
    %v328 = vpack.c.b16 %v314, %v313
    %v329 = vpack.c.b16 %v316, %v315
    %v330 = vpack.c.b16 %v318, %v317
    %v331 = vpack.c.b16 %v320, %v319
    %v332 = vpack.c.b16 %v322, %v321
    %v333 = vpack.c.b16 %v324, %v323
    %v334 = vpack.c.b16 %v326, %v325
    %343 = vmatprep.subr.bf16.mxu0 0
    %344 = vmatpush1.bf16.msra.mxu0 %v327
    %345 = vmatprep.subr.bf16.mxu0 0
    %346 = vmatpush1.bf16.msra.mxu0 %v328
    %347 = vmatprep.subr.bf16.mxu0 0
    %348 = vmatpush1.bf16.msra.mxu0 %v329
    %349 = vmatprep.subr.bf16.mxu0 0
    %350 = vmatpush1.bf16.msra.mxu0 %v330
    %351 = vmatprep.subr.bf16.mxu0 0
    %352 = vmatpush1.bf16.msra.mxu0 %v331
    %353 = vmatprep.subr.bf16.mxu0 0
    %354 = vmatpush1.bf16.msra.mxu0 %v332
    %355 = vmatprep.subr.bf16.mxu0 0
    %356 = vmatpush1.bf16.msra.mxu0 %v333
    %357 = vmatprep.subr.bf16.mxu0 0
    %358 = vmatpush1.bf16.msra.mxu0 %v334
    %359 = vmatprep.subr.bf16.mxu0 0
    %360 = vmatpush1.bf16.msra.mxu0 0
    %361 = vmatprep.subr.bf16.mxu0 0
    %362 = vmatpush1.bf16.msra.mxu0 0
    %363 = vmatprep.subr.bf16.mxu0 0
    %364 = vmatpush1.bf16.msra.mxu0 0
    %365 = vmatprep.subr.bf16.mxu0 0
    %366 = vmatpush1.bf16.msra.mxu0 0
    %367 = vmatprep.subr.bf16.mxu0 0
    %368 = vmatpush1.bf16.msra.mxu0 0
    %369 = vmatprep.subr.bf16.mxu0 0
    %370 = vmatpush1.bf16.msra.mxu0 0
    %371 = vmatprep.subr.bf16.mxu0 0
    %372 = vmatpush1.bf16.msra.mxu0 0
    %373 = vmatprep.subr.bf16.mxu0 0
    %374 = vmatpush1.bf16.msra.mxu0 0
    %375 = vmatprep.mubr.bf16.mxu0 0
    %376 = vmatmul.mubr.bf16.gmra.mrb[0].mxu0 %v271
    %v377 = vpop.f32.mrb[0].mxu0
    %v378 = vadd.f32 %v293, %v377
    %v379 = vpop.f32.mrb[0].mxu0
    %v380 = vpop.f32.mrb[0].mxu0
    %v381 = vadd.f32 %v293, %v380
    %v382 = vpop.f32.mrb[0].mxu0
    %383 = vdwg.mxu0
    %v384 = vxor.u32 %v378, 2147483648
    %v385 = vxor.u32 %v381, 2147483648
    %v386 = vmul.f32 %v384, 1.442695
    %v387 = vpow.pop %v386
    %v388 = vmul.f32 %v385, 1.442695
    %v389 = vpow.pop %v388
    %v390 = vadd.f32 %v387, 1.0
    %v391 = vadd.f32 %v389, 1.0
    %v392 = vrcp.pop %v390
    %v393 = vmul.f32 1.0, %v392
    %v394 = vrcp.pop %v391
    %v395 = vmul.f32 1.0, %v394
    %v396 = vmul.f32 %v378, 0.5
    %v397 = vmul.f32 %v381, 0.5
    %v398 = vmul.f32 %v378, 0.70710677
    %v399 = vmul.f32 %v381, 0.70710677
    %v400 = verf.f32.pop %v398
    %v401 = verf.f32.pop %v399
    %v402 = vadd.f32 %v400, 1.0
    %v403 = vadd.f32 %v401, 1.0
    %v404 = vmul.f32 %v396, %v402
    %v405 = vmul.f32 %v397, %v403
    %v406 = vpack.c.bf16 %v405, %v404
    %v407 = vld [vmem:[#allocation8] sm:$0xf]
    %v408 = vld [vmem:[#allocation8 + $0x4] sm:$0xf]
    %v409 = vld [vmem:[#allocation8 + $0x8] sm:$0xf]
    %v410 = vld [vmem:[#allocation8 + $0xc] sm:$0xf]
    %v411 = vld [vmem:[#allocation8 + $0x10] sm:$0xf]
    %v412 = vld [vmem:[#allocation8 + $0x14] sm:$0xf]
    %v413 = vld [vmem:[#allocation8 + $0x18] sm:$0xf]
    %v414 = vld [vmem:[#allocation8 + $0x1c] sm:$0xf]
    %v415 = vld [vmem:[#allocation8 + $0x20] sm:$0xf]
    %v416 = vld [vmem:[#allocation8 + $0x24] sm:$0xf]
    %v417 = vld [vmem:[#allocation8 + $0x28] sm:$0xf]
    %v418 = vld [vmem:[#allocation8 + $0x2c] sm:$0xf]
    %v419 = vld [vmem:[#allocation8 + $0x30] sm:$0xf]
    %v420 = vld [vmem:[#allocation8 + $0x34] sm:$0xf]
    %v421 = vld [vmem:[#allocation8 + $0x38] sm:$0xf]
    %v422 = vld [vmem:[#allocation8 + $0x3c] sm:$0xf]
    %v423 = vld [vmem:[%s6] sm:$0x1]
    %v425 = vlaneseq
    %v426 = vshrl.u32 %v425, 7
    %v427 = vsub.s32 0, %v426
    %v428 = vrot.slane %v423, %v427
    %v446 = vunpack.c.l.b16 %v407
    %v447 = vunpack.c.l.b16 %v408
    %v448 = vunpack.c.l.b16 %v409
    %v449 = vunpack.c.l.b16 %v410
    %v450 = vunpack.c.l.b16 %v411
    %v451 = vunpack.c.l.b16 %v412
    %v452 = vunpack.c.l.b16 %v413
    %v453 = vunpack.c.l.b16 %v414
    %v454 = vunpack.c.l.b16 %v415
    %v455 = vunpack.c.l.b16 %v416
    %v456 = vunpack.c.l.b16 %v417
    %v457 = vunpack.c.l.b16 %v418
    %v458 = vunpack.c.l.b16 %v419
    %v459 = vunpack.c.l.b16 %v420
    %v460 = vunpack.c.l.b16 %v421
    %v461 = vunpack.c.l.b16 %v422
    %v462 = vpack.c.b16 %v447, %v446
    %v463 = vpack.c.b16 %v449, %v448
    %v464 = vpack.c.b16 %v451, %v450
    %v465 = vpack.c.b16 %v453, %v452
    %v466 = vpack.c.b16 %v455, %v454
    %v467 = vpack.c.b16 %v457, %v456
    %v468 = vpack.c.b16 %v459, %v458
    %v469 = vpack.c.b16 %v461, %v460
    %478 = vmatprep.subr.bf16.mxu0 0
    %479 = vmatpush1.bf16.msra.mxu0 %v462
    %480 = vmatprep.subr.bf16.mxu0 0
    %481 = vmatpush1.bf16.msra.mxu0 %v463
    %482 = vmatprep.subr.bf16.mxu0 0
    %483 = vmatpush1.bf16.msra.mxu0 %v464
    %484 = vmatprep.subr.bf16.mxu0 0
    %485 = vmatpush1.bf16.msra.mxu0 %v465
    %486 = vmatprep.subr.bf16.mxu0 0
    %487 = vmatpush1.bf16.msra.mxu0 %v466
    %488 = vmatprep.subr.bf16.mxu0 0
    %489 = vmatpush1.bf16.msra.mxu0 %v467
    %490 = vmatprep.subr.bf16.mxu0 0
    %491 = vmatpush1.bf16.msra.mxu0 %v468
    %492 = vmatprep.subr.bf16.mxu0 0
    %493 = vmatpush1.bf16.msra.mxu0 %v469
    %494 = vmatprep.subr.bf16.mxu0 0
    %495 = vmatpush1.bf16.msra.mxu0 0
    %496 = vmatprep.subr.bf16.mxu0 0
    %497 = vmatpush1.bf16.msra.mxu0 0
    %498 = vmatprep.subr.bf16.mxu0 0
    %499 = vmatpush1.bf16.msra.mxu0 0
    %500 = vmatprep.subr.bf16.mxu0 0
    %501 = vmatpush1.bf16.msra.mxu0 0
    %502 = vmatprep.subr.bf16.mxu0 0
    %503 = vmatpush1.bf16.msra.mxu0 0
    %504 = vmatprep.subr.bf16.mxu0 0
    %505 = vmatpush1.bf16.msra.mxu0 0
    %506 = vmatprep.subr.bf16.mxu0 0
    %507 = vmatpush1.bf16.msra.mxu0 0
    %508 = vmatprep.subr.bf16.mxu0 0
    %509 = vmatpush1.bf16.msra.mxu0 0
    %510 = vmatprep.mubr.bf16.mxu0 0
    %511 = vmatmul.mubr.bf16.gmra.mrb[0].mxu0 %v406
    %v512 = vpop.f32.mrb[0].mxu0
    %v513 = vadd.f32 %v428, %v512
    %v514 = vpop.f32.mrb[0].mxu0
    %v515 = vpop.f32.mrb[0].mxu0
    %v516 = vadd.f32 %v428, %v515
    %v517 = vpop.f32.mrb[0].mxu0
    %518 = vdwg.mxu0
    %v519 = vld [vmem:[%s7] sm:$0x1]
    %v520 = vld [vmem:[%s8] sm:$0x1]
    %521 = vadd.xlane.f32.xlu0 %v513
    %v522 = vpop.xlane.xlu0 %521
    %523 = vadd.xlane.f32.xlu0 %v516
    %v524 = vpop.xlane.xlu0 %523
    %v525 = vmul.f32 %v522, 0.03125
    %v526 = vmul.f32 %v524, 0.03125
    %v527 = vmul.f32 %v513, %v513
    %v528 = vmul.f32 %v516, %v516
    %529 = vadd.xlane.f32.xlu0 %v527
    %v530 = vpop.xlane.xlu0 %529
    %531 = vadd.xlane.f32.xlu0 %v528
    %v532 = vpop.xlane.xlu0 %531
    %v533 = vmul.f32 %v530, 0.03125
    %v534 = vmul.f32 %v532, 0.03125
    %v535 = vmul.f32 %v525, %v525
    %v536 = vmul.f32 %v526, %v526
    %v537 = vsub.f32 %v533, %v535
    %v538 = vsub.f32 %v534, %v536
    %v539 = vsub.f32 %v513, %v525
    %v540 = vsub.f32 %v516, %v526
    %v541 = vadd.f32 %v537, 1e-05
    %v542 = vadd.f32 %v538, 1e-05
    %v543 = vrsqrt.pop %v541
    %v544 = vrsqrt.pop %v542
    %v545 = vmul.f32 %v539, %v543
    %v546 = vmul.f32 %v540, %v544
    %v548 = vlaneseq
    %v549 = vshrl.u32 %v548, 7
    %v550 = vsub.s32 0, %v549
    %v551 = vrot.slane %v519, %v550
    %v553 = vmul.f32 %v545, %v551
    %v554 = vmul.f32 %v546, %v551
    %v556 = vlaneseq
    %v557 = vshrl.u32 %v556, 7
    %v558 = vsub.s32 0, %v557
    %v559 = vrot.slane %v520, %v558
    %v561 = vadd.f32 %v553, %v559
    %v562 = vadd.f32 %v554, %v559
    %564 = vset.pattern.permute.xlu0 64
    %565 = vperm.xlu0 %564, %v393
    %v566 = vpop.permute.xlu0 %565
    %569 = vset.pattern.permute.xlu0 64
    %570 = vperm.xlu0 %569, %v395
    %v571 = vpop.permute.xlu0 %570
    %v573 = vmul.f32 %v566, %v561
    %v574 = vmul.f32 %v571, %v562
    %v575 = vadd.f32 %v265, %v573
    %v576 = vadd.f32 %v268, %v574
    %v577 = vpack.c.bf16 %v576, %v575
    %s578 = scalar_lea.vmem [#allocation7], 64
    %v579 = vld [vmem:[%s578] sm:$0xf]
    %v580 = vld [vmem:[%s578 + $0x4] sm:$0xf]
    %v581 = vld [vmem:[%s578 + $0x8] sm:$0xf]
    %v582 = vld [vmem:[%s578 + $0xc] sm:$0xf]
    %v583 = vld [vmem:[%s578 + $0x10] sm:$0xf]
    %v584 = vld [vmem:[%s578 + $0x14] sm:$0xf]
    %v585 = vld [vmem:[%s578 + $0x18] sm:$0xf]
    %v586 = vld [vmem:[%s578 + $0x1c] sm:$0xf]
    %v587 = vld [vmem:[%s578 + $0x20] sm:$0xf]
    %v588 = vld [vmem:[%s578 + $0x24] sm:$0xf]
    %v589 = vld [vmem:[%s578 + $0x28] sm:$0xf]
    %v590 = vld [vmem:[%s578 + $0x2c] sm:$0xf]
    %v591 = vld [vmem:[%s578 + $0x30] sm:$0xf]
    %v592 = vld [vmem:[%s578 + $0x34] sm:$0xf]
    %v593 = vld [vmem:[%s578 + $0x38] sm:$0xf]
    %v594 = vld [vmem:[%s578 + $0x3c] sm:$0xf]
    %s595 = scalar_lea.vmem %s4, 1
    %v596 = vld [vmem:[%s595] sm:$0x1]
    %v598 = vlaneseq
    %v599 = vshrl.u32 %v598, 7
    %v600 = vsub.s32 0, %v599
    %v601 = vrot.slane %v596, %v600
    %v619 = vunpack.c.l.b16 %v579
    %v620 = vunpack.c.l.b16 %v580
    %v621 = vunpack.c.l.b16 %v581
    %v622 = vunpack.c.l.b16 %v582
    %v623 = vunpack.c.l.b16 %v583
    %v624 = vunpack.c.l.b16 %v584
    %v625 = vunpack.c.l.b16 %v585
    %v626 = vunpack.c.l.b16 %v586
    %v627 = vunpack.c.l.b16 %v587
    %v628 = vunpack.c.l.b16 %v588
    %v629 = vunpack.c.l.b16 %v589
    %v630 = vunpack.c.l.b16 %v590
    %v631 = vunpack.c.l.b16 %v591
    %v632 = vunpack.c.l.b16 %v592
    %v633 = vunpack.c.l.b16 %v593
    %v634 = vunpack.c.l.b16 %v594
    %v635 = vpack.c.b16 %v620, %v619
    %v636 = vpack.c.b16 %v622, %v621
    %v637 = vpack.c.b16 %v624, %v623
    %v638 = vpack.c.b16 %v626, %v625
    %v639 = vpack.c.b16 %v628, %v627
    %v640 = vpack.c.b16 %v630, %v629
    %v641 = vpack.c.b16 %v632, %v631
    %v642 = vpack.c.b16 %v634, %v633
    %651 = vmatprep.subr.bf16.mxu0 0
    %652 = vmatpush1.bf16.msra.mxu0 %v635
    %653 = vmatprep.subr.bf16.mxu0 0
    %654 = vmatpush1.bf16.msra.mxu0 %v636
    %655 = vmatprep.subr.bf16.mxu0 0
    %656 = vmatpush1.bf16.msra.mxu0 %v637
    %657 = vmatprep.subr.bf16.mxu0 0
    %658 = vmatpush1.bf16.msra.mxu0 %v638
    %659 = vmatprep.subr.bf16.mxu0 0
    %660 = vmatpush1.bf16.msra.mxu0 %v639
    %661 = vmatprep.subr.bf16.mxu0 0
    %662 = vmatpush1.bf16.msra.mxu0 %v640
    %663 = vmatprep.subr.bf16.mxu0 0
    %664 = vmatpush1.bf16.msra.mxu0 %v641
    %665 = vmatprep.subr.bf16.mxu0 0
    %666 = vmatpush1.bf16.msra.mxu0 %v642
    %667 = vmatprep.subr.bf16.mxu0 0
    %668 = vmatpush1.bf16.msra.mxu0 0
    %669 = vmatprep.subr.bf16.mxu0 0
    %670 = vmatpush1.bf16.msra.mxu0 0
    %671 = vmatprep.subr.bf16.mxu0 0
    %672 = vmatpush1.bf16.msra.mxu0 0
    %673 = vmatprep.subr.bf16.mxu0 0
    %674 = vmatpush1.bf16.msra.mxu0 0
    %675 = vmatprep.subr.bf16.mxu0 0
    %676 = vmatpush1.bf16.msra.mxu0 0
    %677 = vmatprep.subr.bf16.mxu0 0
    %678 = vmatpush1.bf16.msra.mxu0 0
    %679 = vmatprep.subr.bf16.mxu0 0
    %680 = vmatpush1.bf16.msra.mxu0 0
    %681 = vmatprep.subr.bf16.mxu0 0
    %682 = vmatpush1.bf16.msra.mxu0 0
    %683 = vmatprep.mubr.bf16.mxu0 0
    %684 = vmatmul.mubr.bf16.gmra.mrb[0].mxu0 %v577
    %v685 = vpop.f32.mrb[0].mxu0
    %v686 = vadd.f32 %v601, %v685
    %v687 = vpop.f32.mrb[0].mxu0
    %v688 = vpop.f32.mrb[0].mxu0
    %v689 = vadd.f32 %v601, %v688
    %v690 = vpop.f32.mrb[0].mxu0
    %691 = vdwg.mxu0
    %v692 = vxor.u32 %v686, 2147483648
    %v693 = vxor.u32 %v689, 2147483648
    %v694 = vmul.f32 %v692, 1.442695
    %v695 = vpow.pop %v694
    %v696 = vmul.f32 %v693, 1.442695
    %v697 = vpow.pop %v696
    %v698 = vadd.f32 %v695, 1.0
    %v699 = vadd.f32 %v697, 1.0
    %v700 = vrcp.pop %v698
    %v701 = vmul.f32 1.0, %v700
    %v702 = vrcp.pop %v699
    %v703 = vmul.f32 1.0, %v702
    %v704 = vmul.f32 %v686, 0.5
    %v705 = vmul.f32 %v689, 0.5
    %v706 = vmul.f32 %v686, 0.70710677
    %v707 = vmul.f32 %v689, 0.70710677
    %v708 = verf.f32.pop %v706
    %v709 = verf.f32.pop %v707
    %v710 = vadd.f32 %v708, 1.0
    %v711 = vadd.f32 %v709, 1.0
    %v712 = vmul.f32 %v704, %v710
    %v713 = vmul.f32 %v705, %v711
    %v714 = vpack.c.bf16 %v713, %v712
    %s715 = scalar_lea.vmem [#allocation8], 64
    %v716 = vld [vmem:[%s715] sm:$0xf]
    %v717 = vld [vmem:[%s715 + $0x4] sm:$0xf]
    %v718 = vld [vmem:[%s715 + $0x8] sm:$0xf]
    %v719 = vld [vmem:[%s715 + $0xc] sm:$0xf]
    %v720 = vld [vmem:[%s715 + $0x10] sm:$0xf]
    %v721 = vld [vmem:[%s715 + $0x14] sm:$0xf]
    %v722 = vld [vmem:[%s715 + $0x18] sm:$0xf]
    %v723 = vld [vmem:[%s715 + $0x1c] sm:$0xf]
    %v724 = vld [vmem:[%s715 + $0x20] sm:$0xf]
    %v725 = vld [vmem:[%s715 + $0x24] sm:$0xf]
    %v726 = vld [vmem:[%s715 + $0x28] sm:$0xf]
    %v727 = vld [vmem:[%s715 + $0x2c] sm:$0xf]
    %v728 = vld [vmem:[%s715 + $0x30] sm:$0xf]
    %v729 = vld [vmem:[%s715 + $0x34] sm:$0xf]
    %v730 = vld [vmem:[%s715 + $0x38] sm:$0xf]
    %v731 = vld [vmem:[%s715 + $0x3c] sm:$0xf]
    %s732 = scalar_lea.vmem %s6, 1
    %v733 = vld [vmem:[%s732] sm:$0x1]
    %v735 = vlaneseq
    %v736 = vshrl.u32 %v735, 7
    %v737 = vsub.s32 0, %v736
    %v738 = vrot.slane %v733, %v737
    %v756 = vunpack.c.l.b16 %v716
    %v757 = vunpack.c.l.b16 %v717
    %v758 = vunpack.c.l.b16 %v718
    %v759 = vunpack.c.l.b16 %v719
    %v760 = vunpack.c.l.b16 %v720
    %v761 = vunpack.c.l.b16 %v721
    %v762 = vunpack.c.l.b16 %v722
    %v763 = vunpack.c.l.b16 %v723
    %v764 = vunpack.c.l.b16 %v724
    %v765 = vunpack.c.l.b16 %v725
    %v766 = vunpack.c.l.b16 %v726
    %v767 = vunpack.c.l.b16 %v727
    %v768 = vunpack.c.l.b16 %v728
    %v769 = vunpack.c.l.b16 %v729
    %v770 = vunpack.c.l.b16 %v730
    %v771 = vunpack.c.l.b16 %v731
    %v772 = vpack.c.b16 %v757, %v756
    %v773 = vpack.c.b16 %v759, %v758
    %v774 = vpack.c.b16 %v761, %v760
    %v775 = vpack.c.b16 %v763, %v762
    %v776 = vpack.c.b16 %v765, %v764
    %v777 = vpack.c.b16 %v767, %v766
    %v778 = vpack.c.b16 %v769, %v768
    %v779 = vpack.c.b16 %v771, %v770
    %788 = vmatprep.subr.bf16.mxu0 0
    %789 = vmatpush1.bf16.msra.mxu0 %v772
    %790 = vmatprep.subr.bf16.mxu0 0
    %791 = vmatpush1.bf16.msra.mxu0 %v773
    %792 = vmatprep.subr.bf16.mxu0 0
    %793 = vmatpush1.bf16.msra.mxu0 %v774
    %794 = vmatprep.subr.bf16.mxu0 0
    %795 = vmatpush1.bf16.msra.mxu0 %v775
    %796 = vmatprep.subr.bf16.mxu0 0
    %797 = vmatpush1.bf16.msra.mxu0 %v776
    %798 = vmatprep.subr.bf16.mxu0 0
    %799 = vmatpush1.bf16.msra.mxu0 %v777
    %800 = vmatprep.subr.bf16.mxu0 0
    %801 = vmatpush1.bf16.msra.mxu0 %v778
    %802 = vmatprep.subr.bf16.mxu0 0
    %803 = vmatpush1.bf16.msra.mxu0 %v779
    %804 = vmatprep.subr.bf16.mxu0 0
    %805 = vmatpush1.bf16.msra.mxu0 0
    %806 = vmatprep.subr.bf16.mxu0 0
    %807 = vmatpush1.bf16.msra.mxu0 0
    %808 = vmatprep.subr.bf16.mxu0 0
    %809 = vmatpush1.bf16.msra.mxu0 0
    %810 = vmatprep.subr.bf16.mxu0 0
    %811 = vmatpush1.bf16.msra.mxu0 0
    %812 = vmatprep.subr.bf16.mxu0 0
    %813 = vmatpush1.bf16.msra.mxu0 0
    %814 = vmatprep.subr.bf16.mxu0 0
    %815 = vmatpush1.bf16.msra.mxu0 0
    %816 = vmatprep.subr.bf16.mxu0 0
    %817 = vmatpush1.bf16.msra.mxu0 0
    %818 = vmatprep.subr.bf16.mxu0 0
    %819 = vmatpush1.bf16.msra.mxu0 0
    %820 = vmatprep.mubr.bf16.mxu0 0
    %821 = vmatmul.mubr.bf16.gmra.mrb[0].mxu0 %v714
    %v822 = vpop.f32.mrb[0].mxu0
    %v823 = vadd.f32 %v738, %v822
    %v824 = vpop.f32.mrb[0].mxu0
    %v825 = vpop.f32.mrb[0].mxu0
    %v826 = vadd.f32 %v738, %v825
    %v827 = vpop.f32.mrb[0].mxu0
    %828 = vdwg.mxu0
    %s829 = scalar_lea.vmem %s7, 1
    %v830 = vld [vmem:[%s829] sm:$0x1]
    %s831 = scalar_lea.vmem %s8, 1
    %v832 = vld [vmem:[%s831] sm:$0x1]
    %833 = vadd.xlane.f32.xlu0 %v823
    %v834 = vpop.xlane.xlu0 %833
    %835 = vadd.xlane.f32.xlu0 %v826
    %v836 = vpop.xlane.xlu0 %835
    %v837 = vmul.f32 %v834, 0.03125
    %v838 = vmul.f32 %v836, 0.03125
    %v839 = vmul.f32 %v823, %v823
    %v840 = vmul.f32 %v826, %v826
    %841 = vadd.xlane.f32.xlu0 %v839
    %v842 = vpop.xlane.xlu0 %841
    %843 = vadd.xlane.f32.xlu0 %v840
    %v844 = vpop.xlane.xlu0 %843
    %v845 = vmul.f32 %v842, 0.03125
    %v846 = vmul.f32 %v844, 0.03125
    %v847 = vmul.f32 %v837, %v837
    %v848 = vmul.f32 %v838, %v838
    %v849 = vsub.f32 %v845, %v847
    %v850 = vsub.f32 %v846, %v848
    %v851 = vsub.f32 %v823, %v837
    %v852 = vsub.f32 %v826, %v838
    %v853 = vadd.f32 %v849, 1e-05
    %v854 = vadd.f32 %v850, 1e-05
    %v855 = vrsqrt.pop %v853
    %v856 = vrsqrt.pop %v854
    %v857 = vmul.f32 %v851, %v855
    %v858 = vmul.f32 %v852, %v856
    %v860 = vlaneseq
    %v861 = vshrl.u32 %v860, 7
    %v862 = vsub.s32 0, %v861
    %v863 = vrot.slane %v830, %v862
    %v865 = vmul.f32 %v857, %v863
    %v866 = vmul.f32 %v858, %v863
    %v868 = vlaneseq
    %v869 = vshrl.u32 %v868, 7
    %v870 = vsub.s32 0, %v869
    %v871 = vrot.slane %v832, %v870
    %v873 = vadd.f32 %v865, %v871
    %v874 = vadd.f32 %v866, %v871
    %876 = vset.pattern.permute.xlu0 64
    %877 = vperm.xlu0 %876, %v701
    %v878 = vpop.permute.xlu0 %877
    %881 = vset.pattern.permute.xlu0 64
    %882 = vperm.xlu0 %881, %v703
    %v883 = vpop.permute.xlu0 %882
    %v885 = vmul.f32 %v878, %v873
    %v886 = vmul.f32 %v883, %v874
    %v887 = vadd.f32 %v575, %v885
    %v888 = vadd.f32 %v576, %v886
    %889 = vst [vmem:[#allocation15 - $0x7] sm:$0x80] %v887
    %890 = vst [vmem:[#allocation15 - $0x6] sm:$0x80] %v888
    %v891 = vld [vmem:[#allocation10] sm:$0xf]
    %v892 = vld [vmem:[#allocation10 + $0x4] sm:$0xf]
    %v893 = vld [vmem:[#allocation10 + $0x8] sm:$0xf]
    %v894 = vld [vmem:[#allocation10 + $0xc] sm:$0xf]
    %v895 = vld [vmem:[#allocation10 + $0x10] sm:$0xf]
    %v896 = vld [vmem:[#allocation10 + $0x14] sm:$0xf]
    %v897 = vld [vmem:[#allocation10 + $0x18] sm:$0xf]
    %v898 = vld [vmem:[#allocation10 + $0x1c] sm:$0xf]
    %v899 = vld [vmem:[#allocation10 + $0x20] sm:$0xf]
    %v900 = vld [vmem:[#allocation10 + $0x24] sm:$0xf]
    %v901 = vld [vmem:[#allocation10 + $0x28] sm:$0xf]
    %v902 = vld [vmem:[#allocation10 + $0x2c] sm:$0xf]
    %v903 = vld [vmem:[#allocation10 + $0x30] sm:$0xf]
    %v904 = vld [vmem:[#allocation10 + $0x34] sm:$0xf]
    %v905 = vld [vmem:[#allocation10 + $0x38] sm:$0xf]
    %v906 = vld [vmem:[#allocation10 + $0x3c] sm:$0xf]
    %v907 = vld [vmem:[%s10] sm:$0x1]
    %v909 = vlaneseq
    %v910 = vshrl.u32 %v909, 7
    %v911 = vsub.s32 0, %v910
    %v912 = vrot.slane %v907, %v911
    %v930 = vunpack.c.l.b16 %v891
    %v931 = vunpack.c.l.b16 %v892
    %v932 = vunpack.c.l.b16 %v893
    %v933 = vunpack.c.l.b16 %v894
    %v934 = vunpack.c.l.b16 %v895
    %v935 = vunpack.c.l.b16 %v896
    %v936 = vunpack.c.l.b16 %v897
    %v937 = vunpack.c.l.b16 %v898
    %v938 = vunpack.c.l.b16 %v899
    %v939 = vunpack.c.l.b16 %v900
    %v940 = vunpack.c.l.b16 %v901
    %v941 = vunpack.c.l.b16 %v902
    %v942 = vunpack.c.l.b16 %v903
    %v943 = vunpack.c.l.b16 %v904
    %v944 = vunpack.c.l.b16 %v905
    %v945 = vunpack.c.l.b16 %v906
    %v946 = vpack.c.b16 %v931, %v930
    %v947 = vpack.c.b16 %v933, %v932
    %v948 = vpack.c.b16 %v935, %v934
    %v949 = vpack.c.b16 %v937, %v936
    %v950 = vpack.c.b16 %v939, %v938
    %v951 = vpack.c.b16 %v941, %v940
    %v952 = vpack.c.b16 %v943, %v942
    %v953 = vpack.c.b16 %v945, %v944
    %962 = vmatprep.subr.bf16.mxu0 0
    %963 = vmatpush1.bf16.msra.mxu0 %v946
    %964 = vmatprep.subr.bf16.mxu0 0
    %965 = vmatpush1.bf16.msra.mxu0 %v947
    %966 = vmatprep.subr.bf16.mxu0 0
    %967 = vmatpush1.bf16.msra.mxu0 %v948
    %968 = vmatprep.subr.bf16.mxu0 0
    %969 = vmatpush1.bf16.msra.mxu0 %v949
    %970 = vmatprep.subr.bf16.mxu0 0
    %971 = vmatpush1.bf16.msra.mxu0 %v950
    %972 = vmatprep.subr.bf16.mxu0 0
    %973 = vmatpush1.bf16.msra.mxu0 %v951
    %974 = vmatprep.subr.bf16.mxu0 0
    %975 = vmatpush1.bf16.msra.mxu0 %v952
    %976 = vmatprep.subr.bf16.mxu0 0
    %977 = vmatpush1.bf16.msra.mxu0 %v953
    %978 = vmatprep.subr.bf16.mxu0 0
    %979 = vmatpush1.bf16.msra.mxu0 0
    %980 = vmatprep.subr.bf16.mxu0 0
    %981 = vmatpush1.bf16.msra.mxu0 0
    %982 = vmatprep.subr.bf16.mxu0 0
    %983 = vmatpush1.bf16.msra.mxu0 0
    %984 = vmatprep.subr.bf16.mxu0 0
    %985 = vmatpush1.bf16.msra.mxu0 0
    %986 = vmatprep.subr.bf16.mxu0 0
    %987 = vmatpush1.bf16.msra.mxu0 0
    %988 = vmatprep.subr.bf16.mxu0 0
    %989 = vmatpush1.bf16.msra.mxu0 0
    %990 = vmatprep.subr.bf16.mxu0 0
    %991 = vmatpush1.bf16.msra.mxu0 0
    %992 = vmatprep.subr.bf16.mxu0 0
    %993 = vmatpush1.bf16.msra.mxu0 0
    %994 = vmatprep.mubr.bf16.mxu0 0
    %995 = vmatmul.mubr.bf16.gmra.mrb[0].mxu0 %v158
    %v996 = vpop.f32.mrb[0].mxu0
    %v997 = vadd.f32 %v912, %v996
    %v998 = vpop.f32.mrb[0].mxu0
    %v999 = vpop.f32.mrb[0].mxu0
    %v1000 = vadd.f32 %v912, %v999
    %v1001 = vpop.f32.mrb[0].mxu0
    %1002 = vdwg.mxu0
    %v1003 = vpack.c.bf16 %v888, %v887
    %v1004 = vld [vmem:[#allocation11] sm:$0xff]
    %v1005 = vld [vmem:[#allocation11 + $0x8] sm:$0xff]
    %v1006 = vld [vmem:[#allocation11 + $0x10] sm:$0xff]
    %v1007 = vld [vmem:[#allocation11 + $0x18] sm:$0xff]
    %v1008 = vld [vmem:[#allocation11 + $0x20] sm:$0xff]
    %v1009 = vld [vmem:[#allocation11 + $0x28] sm:$0xff]
    %v1010 = vld [vmem:[#allocation11 + $0x30] sm:$0xff]
    %v1011 = vld [vmem:[#allocation11 + $0x38] sm:$0xff]
    %v1012 = vld [vmem:[#allocation11 + $0x40] sm:$0xff]
    %v1013 = vld [vmem:[#allocation11 + $0x48] sm:$0xff]
    %v1014 = vld [vmem:[#allocation11 + $0x50] sm:$0xff]
    %v1015 = vld [vmem:[#allocation11 + $0x58] sm:$0xff]
    %v1016 = vld [vmem:[#allocation11 + $0x60] sm:$0xff]
    %v1017 = vld [vmem:[#allocation11 + $0x68] sm:$0xff]
    %v1018 = vld [vmem:[#allocation11 + $0x70] sm:$0xff]
    %v1019 = vld [vmem:[#allocation11 + $0x78] sm:$0xff]
    %v1020 = vld [vmem:[%s12] sm:$0x3]
    %v1022 = vlaneseq
    %v1023 = vshrl.u32 %v1022, 7
    %v1024 = vsub.s32 0, %v1023
    %v1025 = vrot.slane %v1020, %v1024
    %v1026 = vlaneseq
    %v1027 = vshrl.u32 %v1026, 7
    %v1028 = vsub.s32 1, %v1027
    %v1029 = vrot.slane %v1020, %v1028
    %v1048 = vunpack.c.l.b16 %v1004
    %v1049 = vunpack.c.h.b16 %v1004
    %v1050 = vunpack.c.l.b16 %v1005
    %v1051 = vunpack.c.h.b16 %v1005
    %v1052 = vunpack.c.l.b16 %v1006
    %v1053 = vunpack.c.h.b16 %v1006
    %v1054 = vunpack.c.l.b16 %v1007
    %v1055 = vunpack.c.h.b16 %v1007
    %v1056 = vunpack.c.l.b16 %v1008
    %v1057 = vunpack.c.h.b16 %v1008
    %v1058 = vunpack.c.l.b16 %v1009
    %v1059 = vunpack.c.h.b16 %v1009
    %v1060 = vunpack.c.l.b16 %v1010
    %v1061 = vunpack.c.h.b16 %v1010
    %v1062 = vunpack.c.l.b16 %v1011
    %v1063 = vunpack.c.h.b16 %v1011
    %v1064 = vunpack.c.l.b16 %v1012
    %v1065 = vunpack.c.h.b16 %v1012
    %v1066 = vunpack.c.l.b16 %v1013
    %v1067 = vunpack.c.h.b16 %v1013
    %v1068 = vunpack.c.l.b16 %v1014
    %v1069 = vunpack.c.h.b16 %v1014
    %v1070 = vunpack.c.l.b16 %v1015
    %v1071 = vunpack.c.h.b16 %v1015
    %v1072 = vunpack.c.l.b16 %v1016
    %v1073 = vunpack.c.h.b16 %v1016
    %v1074 = vunpack.c.l.b16 %v1017
    %v1075 = vunpack.c.h.b16 %v1017
    %v1076 = vunpack.c.l.b16 %v1018
    %v1077 = vunpack.c.h.b16 %v1018
    %v1078 = vunpack.c.l.b16 %v1019
    %v1079 = vunpack.c.h.b16 %v1019
    %v1080 = vpack.c.b16 %v1050, %v1048
    %v1081 = vpack.c.b16 %v1051, %v1049
    %v1082 = vpack.c.b16 %v1054, %v1052
    %v1083 = vpack.c.b16 %v1055, %v1053
    %v1084 = vpack.c.b16 %v1058, %v1056
    %v1085 = vpack.c.b16 %v1059, %v1057
    %v1086 = vpack.c.b16 %v1062, %v1060
    %v1087 = vpack.c.b16 %v1063, %v1061
    %v1088 = vpack.c.b16 %v1066, %v1064
    %v1089 = vpack.c.b16 %v1067, %v1065
    %v1090 = vpack.c.b16 %v1070, %v1068
    %v1091 = vpack.c.b16 %v1071, %v1069
    %v1092 = vpack.c.b16 %v1074, %v1072
    %v1093 = vpack.c.b16 %v1075, %v1073
    %v1094 = vpack.c.b16 %v1078, %v1076
    %v1095 = vpack.c.b16 %v1079, %v1077
    %1112 = vmatprep.subr.bf16.mxu0 %v1081
    %1113 = vmatpush1.bf16.msra.mxu0 %v1080
    %1114 = vmatprep.subr.bf16.mxu0 %v1083
    %1115 = vmatpush1.bf16.msra.mxu0 %v1082
    %1116 = vmatprep.subr.bf16.mxu0 %v1085
    %1117 = vmatpush1.bf16.msra.mxu0 %v1084
    %1118 = vmatprep.subr.bf16.mxu0 %v1087
    %1119 = vmatpush1.bf16.msra.mxu0 %v1086
    %1120 = vmatprep.subr.bf16.mxu0 %v1089
    %1121 = vmatpush1.bf16.msra.mxu0 %v1088
    %1122 = vmatprep.subr.bf16.mxu0 %v1091
    %1123 = vmatpush1.bf16.msra.mxu0 %v1090
    %1124 = vmatprep.subr.bf16.mxu0 %v1093
    %1125 = vmatpush1.bf16.msra.mxu0 %v1092
    %1126 = vmatprep.subr.bf16.mxu0 %v1095
    %1127 = vmatpush1.bf16.msra.mxu0 %v1094
    %1128 = vmatprep.subr.bf16.mxu0 0
    %1129 = vmatpush1.bf16.msra.mxu0 0
    %1130 = vmatprep.subr.bf16.mxu0 0
    %1131 = vmatpush1.bf16.msra.mxu0 0
    %1132 = vmatprep.subr.bf16.mxu0 0
    %1133 = vmatpush1.bf16.msra.mxu0 0
    %1134 = vmatprep.subr.bf16.mxu0 0
    %1135 = vmatpush1.bf16.msra.mxu0 0
    %1136 = vmatprep.subr.bf16.mxu0 0
    %1137 = vmatpush1.bf16.msra.mxu0 0
    %1138 = vmatprep.subr.bf16.mxu0 0
    %1139 = vmatpush1.bf16.msra.mxu0 0
    %1140 = vmatprep.subr.bf16.mxu0 0
    %1141 = vmatpush1.bf16.msra.mxu0 0
    %1142 = vmatprep.subr.bf16.mxu0 0
    %1143 = vmatpush1.bf16.msra.mxu0 0
    %1144 = vmatprep.mubr.bf16.mxu0 0
    %1145 = vmatmul.mubr.bf16.gmra.mrb[0].mxu0 %v1003
    %v1146 = vpop.f32.mrb[0].mxu0
    %v1147 = vadd.f32 %v1025, %v1146
    %v1148 = vpop.f32.mrb[0].mxu0
    %v1149 = vadd.f32 %v1029, %v1148
    %v1150 = vpop.f32.mrb[0].mxu0
    %v1151 = vadd.f32 %v1025, %v1150
    %v1152 = vpop.f32.mrb[0].mxu0
    %v1153 = vadd.f32 %v1029, %v1152
    %1154 = vdwg.mxu0
    %v1155 = vpack.c.bf16 %v997, %v997
    %v1156 = vpack.c.bf16 %v1000, %v1000
    %v1157 = vpack.c.bf16 %v1147, %v1147
    %v1158 = vpack.c.bf16 %v1151, %v1151
    %1159 = vmatprep.subr.bf16.mxu0 0
    %1160 = vmatpush1.bf16.xpose.msra.mxu0 %v1157
    %1161 = vmatprep.subr.bf16.mxu0 0
    %1162 = vmatpush1.bf16.xpose.msra.mxu0 0
    %1163 = vmatprep.subr.bf16.mxu0 0
    %1164 = vmatpush1.bf16.xpose.msra.mxu0 0
    %1165 = vmatprep.subr.bf16.mxu0 0
    %1166 = vmatpush1.bf16.xpose.msra.mxu0 0
    %1167 = vmatprep.subr.bf16.mxu0 0
    %1168 = vmatpush1.bf16.xpose.msra.mxu0 0
    %1169 = vmatprep.subr.bf16.mxu0 0
    %1170 = vmatpush1.bf16.xpose.msra.mxu0 0
    %1171 = vmatprep.subr.bf16.mxu0 0
    %1172 = vmatpush1.bf16.xpose.msra.mxu0 0
    %1173 = vmatprep.subr.bf16.mxu0 0
    %1174 = vmatpush1.bf16.xpose.msra.mxu0 0
    %1175 = vmatprep.subr.bf16.mxu0 0
    %1176 = vmatpush1.bf16.xpose.msra.mxu0 0
    %1177 = vmatprep.subr.bf16.mxu0 0
    %1178 = vmatpush1.bf16.xpose.msra.mxu0 0
    %1179 = vmatprep.subr.bf16.mxu0 0
    %1180 = vmatpush1.bf16.xpose.msra.mxu0 0
    %1181 = vmatprep.subr.bf16.mxu0 0
    %1182 = vmatpush1.bf16.xpose.msra.mxu0 0
    %1183 = vmatprep.subr.bf16.mxu0 0
    %1184 = vmatpush1.bf16.xpose.msra.mxu0 0
    %1185 = vmatprep.subr.bf16.mxu0 0
    %1186 = vmatpush1.bf16.xpose.msra.mxu0 0
    %1187 = vmatprep.subr.bf16.mxu0 0
    %1188 = vmatpush1.bf16.xpose.msra.mxu0 0
    %1189 = vmatprep.subr.bf16.mxu0 0
    %1190 = vmatpush1.bf16.xpose.msra.mxu0 0
    %1191 = vmatprep.mubr.bf16.mxu0 0
    %1192 = vmatmul.mubr.bf16.gmra.mrb[0].mxu0 %v1155
    %v1193 = vpop.f32.mrb[0].mxu0
    %v1194 = vadd.f32 0.0, %v1193
    %v1195 = vpop.f32.mrb[0].mxu0
    %v1196 = vpop.f32.mrb[0].mxu0
    %v1197 = vpop.f32.mrb[0].mxu0
    %1198 = vdwg.mxu0
    %1199 = vmatprep.subr.bf16.mxu0 0
    %1200 = vmatpush1.bf16.xpose.msra.mxu0 %v1158
    %1201 = vmatprep.subr.bf16.mxu0 0
    %1202 = vmatpush1.bf16.xpose.msra.mxu0 0
    %1203 = vmatprep.subr.bf16.mxu0 0
    %1204 = vmatpush1.bf16.xpose.msra.mxu0 0
    %1205 = vmatprep.subr.bf16.mxu0 0
    %1206 = vmatpush1.bf16.xpose.msra.mxu0 0
    %1207 = vmatprep.subr.bf16.mxu0 0
    %1208 = vmatpush1.bf16.xpose.msra.mxu0 0
    %1209 = vmatprep.subr.bf16.mxu0 0
    %1210 = vmatpush1.bf16.xpose.msra.mxu0 0
    %1211 = vmatprep.subr.bf16.mxu0 0
    %1212 = vmatpush1.bf16.xpose.msra.mxu0 0
    %1213 = vmatprep.subr.bf16.mxu0 0
    %1214 = vmatpush1.bf16.xpose.msra.mxu0 0
    %1215 = vmatprep.subr.bf16.mxu0 0
    %1216 = vmatpush1.bf16.xpose.msra.mxu0 0
    %1217 = vmatprep.subr.bf16.mxu0 0
    %1218 = vmatpush1.bf16.xpose.msra.mxu0 0
    %1219 = vmatprep.subr.bf16.mxu0 0
    %1220 = vmatpush1.bf16.xpose.msra.mxu0 0
    %1221 = vmatprep.subr.bf16.mxu0 0
    %1222 = vmatpush1.bf16.xpose.msra.mxu0 0
    %1223 = vmatprep.subr.bf16.mxu0 0
    %1224 = vmatpush1.bf16.xpose.msra.mxu0 0
    %1225 = vmatprep.subr.bf16.mxu0 0
    %1226 = vmatpush1.bf16.xpose.msra.mxu0 0
    %1227 = vmatprep.subr.bf16.mxu0 0
    %1228 = vmatpush1.bf16.xpose.msra.mxu0 0
    %1229 = vmatprep.subr.bf16.mxu0 0
    %1230 = vmatpush1.bf16.xpose.msra.mxu0 0
    %1231 = vmatprep.mubr.bf16.mxu0 0
    %1232 = vmatmul.mubr.bf16.gmra.mrb[0].mxu0 %v1156
    %v1233 = vpop.f32.mrb[0].mxu0
    %v1234 = vadd.f32 0.0, %v1233
    %v1235 = vpop.f32.mrb[0].mxu0
    %v1236 = vpop.f32.mrb[0].mxu0
    %v1237 = vpop.f32.mrb[0].mxu0
    %1238 = vdwg.mxu0
    %v1239 = vmul.f32 %v1194, 0.17677669
    %v1240 = vmul.f32 %v1234, 0.17677669
    %vm1241 = vcmask 64512
    %v1242 = vsel %vm1241, %v1239, -inf
    %1243 = vmax.xlane.f32.xlu0 %v1242
    %v1244 = vpop.xlane.xlu0 %1243
    %v1245 = vsel %vm1241, %v1240, -inf
    %1246 = vmax.xlane.f32.xlu0 %v1245
    %v1247 = vpop.xlane.xlu0 %1246
    %v1248 = vsub.f32 %v1239, %v1244
    %v1249 = vsub.f32 %v1240, %v1247
    %v1250 = vmul.f32 %v1248, 1.442695
    %v1251 = vpow.pop %v1250
    %v1252 = vmul.f32 %v1249, 1.442695
    %v1253 = vpow.pop %v1252
    %v1254 = vsel %vm1241, %v1251, 0.0
    %1255 = vadd.xlane.f32.xlu0 %v1254
    %v1256 = vpop.xlane.xlu0 %1255
    %v1257 = vsel %vm1241, %v1253, 0.0
    %1258 = vadd.xlane.f32.xlu0 %v1257
    %v1259 = vpop.xlane.xlu0 %1258
    %v1260 = vrcp.pop %v1256
    %v1261 = vrcp.pop %v1259
    %v1262 = vmul.f32 %v1251, %v1260
    %v1263 = vmul.f32 %v1253, %v1261
    %v1264 = vpack.c.bf16 %v1262, %v1262
    %v1265 = vpack.c.bf16 %v1263, %v1263
    %v1266 = vpack.c.bf16 %v1149, %v1149
    %v1267 = vpack.c.bf16 %v1153, %v1153
    %v1269 = vsel %vm1241, %v1264, 0
    %vm1271 = vcmask 1043456
    %v1273 = vsel %vm1271, %v1266, 0
    %1275 = vmatprep.subr.bf16.mxu0 0
    %1276 = vmatpush1.bf16.msra.mxu0 %v1273
    %1277 = vmatprep.subr.bf16.mxu0 0
    %1278 = vmatpush1.bf16.msra.mxu0 0
    %1279 = vmatprep.subr.bf16.mxu0 0
    %1280 = vmatpush1.bf16.msra.mxu0 0
    %1281 = vmatprep.subr.bf16.mxu0 0
    %1282 = vmatpush1.bf16.msra.mxu0 0
    %1283 = vmatprep.subr.bf16.mxu0 0
    %1284 = vmatpush1.bf16.msra.mxu0 0
    %1285 = vmatprep.subr.bf16.mxu0 0
    %1286 = vmatpush1.bf16.msra.mxu0 0
    %1287 = vmatprep.subr.bf16.mxu0 0
    %1288 = vmatpush1.bf16.msra.mxu0 0
    %1289 = vmatprep.subr.bf16.mxu0 0
    %1290 = vmatpush1.bf16.msra.mxu0 0
    %1291 = vmatprep.subr.bf16.mxu0 0
    %1292 = vmatpush1.bf16.msra.mxu0 0
    %1293 = vmatprep.subr.bf16.mxu0 0
    %1294 = vmatpush1.bf16.msra.mxu0 0
    %1295 = vmatprep.subr.bf16.mxu0 0
    %1296 = vmatpush1.bf16.msra.mxu0 0
    %1297 = vmatprep.subr.bf16.mxu0 0
    %1298 = vmatpush1.bf16.msra.mxu0 0
    %1299 = vmatprep.subr.bf16.mxu0 0
    %1300 = vmatpush1.bf16.msra.mxu0 0
    %1301 = vmatprep.subr.bf16.mxu0 0
    %1302 = vmatpush1.bf16.msra.mxu0 0
    %1303 = vmatprep.subr.bf16.mxu0 0
    %1304 = vmatpush1.bf16.msra.mxu0 0
    %1305 = vmatprep.subr.bf16.mxu0 0
    %1306 = vmatpush1.bf16.msra.mxu0 0
    %1307 = vmatprep.mubr.bf16.mxu0 0
    %1308 = vmatmul.mubr.bf16.gmra.mrb[0].mxu0 %v1269
    %v1309 = vpop.f32.mrb[0].mxu0
    %v1310 = vadd.f32 0.0, %v1309
    %v1311 = vpop.f32.mrb[0].mxu0
    %v1312 = vpop.f32.mrb[0].mxu0
    %v1313 = vpop.f32.mrb[0].mxu0
    %1314 = vdwg.mxu0
    %v1316 = vsel %vm1241, %v1265, 0
    %v1319 = vsel %vm1271, %v1267, 0
    %1321 = vmatprep.subr.bf16.mxu0 0
    %1322 = vmatpush1.bf16.msra.mxu0 %v1319
    %1323 = vmatprep.subr.bf16.mxu0 0
    %1324 = vmatpush1.bf16.msra.mxu0 0
    %1325 = vmatprep.subr.bf16.mxu0 0
    %1326 = vmatpush1.bf16.msra.mxu0 0
    %1327 = vmatprep.subr.bf16.mxu0 0
    %1328 = vmatpush1.bf16.msra.mxu0 0
    %1329 = vmatprep.subr.bf16.mxu0 0
    %1330 = vmatpush1.bf16.msra.mxu0 0
    %1331 = vmatprep.subr.bf16.mxu0 0
    %1332 = vmatpush1.bf16.msra.mxu0 0
    %1333 = vmatprep.subr.bf16.mxu0 0
    %1334 = vmatpush1.bf16.msra.mxu0 0
    %1335 = vmatprep.subr.bf16.mxu0 0
    %1336 = vmatpush1.bf16.msra.mxu0 0
    %1337 = vmatprep.subr.bf16.mxu0 0
    %1338 = vmatpush1.bf16.msra.mxu0 0
    %1339 = vmatprep.subr.bf16.mxu0 0
    %1340 = vmatpush1.bf16.msra.mxu0 0
    %1341 = vmatprep.subr.bf16.mxu0 0
    %1342 = vmatpush1.bf16.msra.mxu0 0
    %1343 = vmatprep.subr.bf16.mxu0 0
    %1344 = vmatpush1.bf16.msra.mxu0 0
    %1345 = vmatprep.subr.bf16.mxu0 0
    %1346 = vmatpush1.bf16.msra.mxu0 0
    %1347 = vmatprep.subr.bf16.mxu0 0
    %1348 = vmatpush1.bf16.msra.mxu0 0
    %1349 = vmatprep.subr.bf16.mxu0 0
    %1350 = vmatpush1.bf16.msra.mxu0 0
    %1351 = vmatprep.subr.bf16.mxu0 0
    %1352 = vmatpush1.bf16.msra.mxu0 0
    %1353 = vmatprep.mubr.bf16.mxu0 0
    %1354 = vmatmul.mubr.bf16.gmra.mrb[0].mxu0 %v1316
    %v1355 = vpop.f32.mrb[0].mxu0
    %v1356 = vadd.f32 0.0, %v1355
    %v1357 = vpop.f32.mrb[0].mxu0
    %v1358 = vpop.f32.mrb[0].mxu0
    %v1359 = vpop.f32.mrb[0].mxu0
    %1360 = vdwg.mxu0
    %v1361 = vadd.f32 %v887, %v1310
    %v1362 = vadd.f32 %v888, %v1356
    %v1363 = vpack.c.bf16 %v1362, %v1361
    %v1364 = vld [vmem:[#allocation13] sm:$0xf]
    %v1365 = vld [vmem:[#allocation13 + $0x4] sm:$0xf]
    %v1366 = vld [vmem:[#allocation13 + $0x8] sm:$0xf]
    %v1367 = vld [vmem:[#allocation13 + $0xc] sm:$0xf]
    %v1368 = vld [vmem:[#allocation13 + $0x10] sm:$0xf]
    %v1369 = vld [vmem:[#allocation13 + $0x14] sm:$0xf]
    %v1370 = vld [vmem:[#allocation13 + $0x18] sm:$0xf]
    %v1371 = vld [vmem:[#allocation13 + $0x1c] sm:$0xf]
    %v1372 = vld [vmem:[#allocation13 + $0x20] sm:$0xf]
    %v1373 = vld [vmem:[#allocation13 + $0x24] sm:$0xf]
    %v1374 = vld [vmem:[#allocation13 + $0x28] sm:$0xf]
    %v1375 = vld [vmem:[#allocation13 + $0x2c] sm:$0xf]
    %v1376 = vld [vmem:[#allocation13 + $0x30] sm:$0xf]
    %v1377 = vld [vmem:[#allocation13 + $0x34] sm:$0xf]
    %v1378 = vld [vmem:[#allocation13 + $0x38] sm:$0xf]
    %v1379 = vld [vmem:[#allocation13 + $0x3c] sm:$0xf]
    %v1380 = vld [vmem:[%s14] sm:$0x1]
    %v1382 = vlaneseq
    %v1383 = vshrl.u32 %v1382, 7
    %v1384 = vsub.s32 0, %v1383
    %v1385 = vrot.slane %v1380, %v1384
    %v1403 = vunpack.c.l.b16 %v1364
    %v1404 = vunpack.c.l.b16 %v1365
    %v1405 = vunpack.c.l.b16 %v1366
    %v1406 = vunpack.c.l.b16 %v1367
    %v1407 = vunpack.c.l.b16 %v1368
    %v1408 = vunpack.c.l.b16 %v1369
    %v1409 = vunpack.c.l.b16 %v1370
    %v1410 = vunpack.c.l.b16 %v1371
    %v1411 = vunpack.c.l.b16 %v1372
    %v1412 = vunpack.c.l.b16 %v1373
    %v1413 = vunpack.c.l.b16 %v1374
    %v1414 = vunpack.c.l.b16 %v1375
    %v1415 = vunpack.c.l.b16 %v1376
    %v1416 = vunpack.c.l.b16 %v1377
    %v1417 = vunpack.c.l.b16 %v1378
    %v1418 = vunpack.c.l.b16 %v1379
    %v1419 = vpack.c.b16 %v1404, %v1403
    %v1420 = vpack.c.b16 %v1406, %v1405
    %v1421 = vpack.c.b16 %v1408, %v1407
    %v1422 = vpack.c.b16 %v1410, %v1409
    %v1423 = vpack.c.b16 %v1412, %v1411
    %v1424 = vpack.c.b16 %v1414, %v1413
    %v1425 = vpack.c.b16 %v1416, %v1415
    %v1426 = vpack.c.b16 %v1418, %v1417
    %1435 = vmatprep.subr.bf16.mxu0 0
    %1436 = vmatpush1.bf16.msra.mxu0 %v1419
    %1437 = vmatprep.subr.bf16.mxu0 0
    %1438 = vmatpush1.bf16.msra.mxu0 %v1420
    %1439 = vmatprep.subr.bf16.mxu0 0
    %1440 = vmatpush1.bf16.msra.mxu0 %v1421
    %1441 = vmatprep.subr.bf16.mxu0 0
    %1442 = vmatpush1.bf16.msra.mxu0 %v1422
    %1443 = vmatprep.subr.bf16.mxu0 0
    %1444 = vmatpush1.bf16.msra.mxu0 %v1423
    %1445 = vmatprep.subr.bf16.mxu0 0
    %1446 = vmatpush1.bf16.msra.mxu0 %v1424
    %1447 = vmatprep.subr.bf16.mxu0 0
    %1448 = vmatpush1.bf16.msra.mxu0 %v1425
    %1449 = vmatprep.subr.bf16.mxu0 0
    %1450 = vmatpush1.bf16.msra.mxu0 %v1426
    %1451 = vmatprep.subr.bf16.mxu0 0
    %1452 = vmatpush1.bf16.msra.mxu0 0
    %1453 = vmatprep.subr.bf16.mxu0 0
    %1454 = vmatpush1.bf16.msra.mxu0 0
    %1455 = vmatprep.subr.bf16.mxu0 0
    %1456 = vmatpush1.bf16.msra.mxu0 0
    %1457 = vmatprep.subr.bf16.mxu0 0
    %1458 = vmatpush1.bf16.msra.mxu0 0
    %1459 = vmatprep.subr.bf16.mxu0 0
    %1460 = vmatpush1.bf16.msra.mxu0 0
    %1461 = vmatprep.subr.bf16.mxu0 0
    %1462 = vmatpush1.bf16.msra.mxu0 0
    %1463 = vmatprep.subr.bf16.mxu0 0
    %1464 = vmatpush1.bf16.msra.mxu0 0
    %1465 = vmatprep.subr.bf16.mxu0 0
    %1466 = vmatpush1.bf16.msra.mxu0 0
    %1467 = vmatprep.mubr.bf16.mxu0 0
    %1468 = vmatmul.mubr.bf16.gmra.mrb[0].mxu0 %v1363
    %v1469 = vpop.f32.mrb[0].mxu0
    %v1470 = vadd.f32 %v1385, %v1469
    %v1471 = vpop.f32.mrb[0].mxu0
    %v1472 = vpop.f32.mrb[0].mxu0
    %v1473 = vadd.f32 %v1385, %v1472
    %v1474 = vpop.f32.mrb[0].mxu0
    %1475 = vdwg.mxu0
    %v1476 = vadd.f32 %v156, %v1470
    %v1477 = vadd.f32 %v157, %v1473
    %v1478 = vld [vmem:[%s15] sm:$0x1]
    %v1479 = vld [vmem:[%s16] sm:$0x1]
    %1480 = vadd.xlane.f32.xlu0 %v1476
    %v1481 = vpop.xlane.xlu0 %1480
    %1482 = vadd.xlane.f32.xlu0 %v1477
    %v1483 = vpop.xlane.xlu0 %1482
    %v1484 = vmul.f32 %v1481, 0.03125
    %v1485 = vmul.f32 %v1483, 0.03125
    %v1486 = vmul.f32 %v1476, %v1476
    %v1487 = vmul.f32 %v1477, %v1477
    %1488 = vadd.xlane.f32.xlu0 %v1486
    %v1489 = vpop.xlane.xlu0 %1488
    %1490 = vadd.xlane.f32.xlu0 %v1487
    %v1491 = vpop.xlane.xlu0 %1490
    %v1492 = vmul.f32 %v1489, 0.03125
    %v1493 = vmul.f32 %v1491, 0.03125
    %v1494 = vmul.f32 %v1484, %v1484
    %v1495 = vmul.f32 %v1485, %v1485
    %v1496 = vsub.f32 %v1492, %v1494
    %v1497 = vsub.f32 %v1493, %v1495
    %v1498 = vsub.f32 %v1476, %v1484
    %v1499 = vsub.f32 %v1477, %v1485
    %v1500 = vadd.f32 %v1496, 1e-05
    %v1501 = vadd.f32 %v1497, 1e-05
    %v1502 = vrsqrt.pop %v1500
    %v1503 = vrsqrt.pop %v1501
    %v1504 = vmul.f32 %v1498, %v1502
    %v1505 = vmul.f32 %v1499, %v1503
    %v1507 = vlaneseq
    %v1508 = vshrl.u32 %v1507, 7
    %v1509 = vsub.s32 0, %v1508
    %v1510 = vrot.slane %v1478, %v1509
    %v1512 = vmul.f32 %v1504, %v1510
    %v1513 = vmul.f32 %v1505, %v1510
    %v1515 = vlaneseq
    %v1516 = vshrl.u32 %v1515, 7
    %v1517 = vsub.s32 0, %v1516
    %v1518 = vrot.slane %v1479, %v1517
    %v1520 = vadd.f32 %v1512, %v1518
    %v1521 = vadd.f32 %v1513, %v1518
    %1522 = vst [vmem:[#allocation14] sm:$0xff] %v1520
    %1523 = vst [vmem:[#allocation14 + $0x8] sm:$0xff] %v1521
    // Predicated region
    $region98: #{tpu_custom_call.1} parent=1 // pred_check
      _
    $region99: #{tpu_custom_call.1} parent=1 // pred_check_branch
      %1525 = sbr.rel (0) target = $region101
    $region100: #{tpu_custom_call.1} parent=1 // pred_region
      %s1527 = ssub.s32 256, 256
      %1528 = vsyncadd [#allocation4], %s1527
      %s1529 = sshll.u32 [#allocation14], 4
      %s1530 = int_to_ptr.vmem [resolvable:$true] %s1529
      %1535 = dma.vmem_to_hbm [thread:$0]  %s1530, 256, %s17, [#allocation4], 128, 128, 8
    $region101: #{tpu_custom_call.1} parent=1 // pred_fallthru
      _
    // Predicated region
    $region102: #{tpu_custom_call.1} parent=1 // pred_check
      _
    $region103: #{tpu_custom_call.1} parent=1 // pred_check_branch
      %1537 = sbr.rel (0) target = $region105
    $region104: #{tpu_custom_call.1} parent=1 // pred_region
      %s1539 = ssub.s32 32, 32
      %1540 = vsyncadd [#allocation16], %s1539
      %s1541 = sshll.u32 [#allocation15], 4
      %s1542 = int_to_ptr.vmem [resolvable:$true] %s1541
      %1547 = dma.vmem_to_hbm [thread:$0]  %s1542, 32, %s18, [#allocation16], 16, 16, 1
    $region105: #{tpu_custom_call.1} parent=1 // pred_fallthru
      _
    // Predicated region
    $region106: #{tpu_custom_call.1} parent=1 // pred_check
      _
    $region107: #{tpu_custom_call.1} parent=1 // pred_check_branch
      %1549 = sbr.rel (0) target = $region109
    $region108: #{tpu_custom_call.1} parent=1 // pred_region
      %1550 = dma.done [#allocation4], 256
    $region109: #{tpu_custom_call.1} parent=1 // pred_fallthru
      _
    // Predicated region
    $region110: #{tpu_custom_call.1} parent=1 // pred_check
      _
    $region111: #{tpu_custom_call.1} parent=1 // pred_check_branch
      %1552 = sbr.rel (0) target = $region113
    $region112: #{tpu_custom_call.1} parent=1 // pred_region
      %1553 = dma.done [#allocation16], 32
    $region113: #{tpu_custom_call.1} parent=1 // pred_fallthru
      _
    %1554 = vsyncpa [#allocation3], 1
    %1555 = vsyncpa [#allocation6], 1
    %1556 = vsyncpa [#allocation9], 1
    %1557 = vsyncpa [#allocation12], 1
    %1558 = vsyncpa [#allocation4], 1
    %1559 = vsyncpa [#allocation16], 1

</llo_original>
